<compile_context>
chip_gen: v7x
topology: tpu7x:2x2x1
jax: 0.10.0
libtpu: 0.0.40
codegen_flags: <defaults>
</compile_context>

<pallas_src>
import math
import jax
import jax.numpy as jnp
from jax.experimental import pallas as pl
from jax.experimental.pallas import tpu as pltpu

# ---------------- configuration (small, consistent with the module) -----------
BATCH = 2
SEQ = 8
HIDDEN = 32
NUM_HEADS = 4
HEAD_DIM = HIDDEN // NUM_HEADS
INTERMEDIATE = 4 * HIDDEN          # 128
BOTTLENECK = 64
LN_EPS = 1e-5
MASK_VAL = float(jnp.finfo(jnp.float32).min)

_MID_COLS = INTERMEDIATE + BOTTLENECK     # 192  [wi | wad]
_OUT_ROWS = INTERMEDIATE + BOTTLENECK     # 192  [wo ; wau]


def _gelu_exact(x):
    # torch.nn.functional.gelu default (erf formulation)
    return 0.5 * x * (1.0 + jax.lax.erf(x * (1.0 / math.sqrt(2.0))))


def _layer_norm(v, g, b):
    mu = jnp.mean(v, axis=-1, keepdims=True)
    var = jnp.mean((v - mu) ** 2, axis=-1, keepdims=True)
    return (v - mu) * jax.lax.rsqrt(var + LN_EPS) * g + b


# ------------------------------- kernel ---------------------------------------
def gpt2_layer_kernel(x_ref, pad_ref, wqkv_ref, bqkv_ref, wattn_ref,
                      wmid_ref, wout_ref, bias_ref, out_ref):
    x = x_ref[0]                         # (S, H)  f32  (one batch element)
    pad = pad_ref[0]                     # (1, S)  f32  additive per-key padding mask
    S = x.shape[0]

    bias = bias_ref[...]                 # (4, 128) f32 packed biases + LN params
    battn = bias[0:1, 0:HIDDEN]
    bo = bias[0:1, HIDDEN:2 * HIDDEN]
    bau = bias[0:1, 2 * HIDDEN:3 * HIDDEN]
    bi = bias[1:2, 0:INTERMEDIATE]
    bad = bias[2:3, 0:BOTTLENECK]
    ln1_g = bias[3:4, 0:HIDDEN]
    ln1_b = bias[3:4, HIDDEN:2 * HIDDEN]
    ln2_g = bias[3:4, 2 * HIDDEN:3 * HIDDEN]
    ln2_b = bias[3:4, 3 * HIDDEN:4 * HIDDEN]

    # ---- pre-attention LayerNorm (f32) ---------------------------------------
    ln1 = _layer_norm(x, ln1_g, ln1_b)

    # ---- fused head-batched QKV projection (scale folded into Wq/bq) ---------
    ln1h = jnp.broadcast_to(ln1.astype(jnp.bfloat16), (NUM_HEADS, S, HIDDEN))
    qkv = jnp.einsum('hse,hef->hsf', ln1h, wqkv_ref[...],
                     preferred_element_type=jnp.float32) + bqkv_ref[...]   # (NH,S,3*HD)
    q = qkv[..., 0:HEAD_DIM]
    k = qkv[..., HEAD_DIM:2 * HEAD_DIM]
    v = qkv[..., 2 * HEAD_DIM:3 * HEAD_DIM]

    # ---- scores -> in-kernel causal + padding mask -> softmax ----------------
    s = jnp.einsum('hqd,hkd->hqk', q.astype(jnp.bfloat16), k.astype(jnp.bfloat16),
                   preferred_element_type=jnp.float32)                     # (NH,S,S)
    s = s + pad                                       # additive per-key padding mask
    rq = jax.lax.broadcasted_iota(jnp.int32, (S, S), 0)
    rk = jax.lax.broadcasted_iota(jnp.int32, (S, S), 1)
    s = jnp.where((rq >= rk)[None, :, :], s, MASK_VAL)  # causal, no -inf possible
    s = s - jnp.max(s, axis=-1, keepdims=True)
    p = jnp.exp(s)
    p = p * pl.reciprocal(jnp.sum(p, axis=-1, keepdims=True), approx=True)

    ctx = jnp.einsum('hqk,hkd->hqd', p.astype(jnp.bfloat16), v.astype(jnp.bfloat16),
                     preferred_element_type=jnp.float32)                   # (NH,S,HD)

    # ---- head merge folded into attention output projection + residual -------
    attn = jnp.einsum('hqd,hdo->hqo', ctx.astype(jnp.bfloat16), wattn_ref[...],
                      preferred_element_type=jnp.float32).sum(axis=0)      # (S, H)
    h1 = x + attn + battn                                # dropout == identity (eval)

    # ---- out LayerNorm + feed-forward + residual ------------------------------
    ln2 = _layer_norm(h1, ln2_g, ln2_b)
    wmid = wmid_ref[...]                                 # (H, 192) bf16 [wi | wad]
    wout = wout_ref[...]                                 # (192, H) bf16 [wo ; wau]
    ff = jnp.dot(ln2.astype(jnp.bfloat16), wmid[:, 0:INTERMEDIATE],
                 preferred_element_type=jnp.float32) + bi
    ff = _gelu_exact(ff)
    ff = jnp.dot(ff.astype(jnp.bfloat16), wout[0:INTERMEDIATE, :],
                 preferred_element_type=jnp.float32) + bo
    h2 = h1 + ff

    # ---- adapter (down -> GELU -> up) + residual -------------------------------
    ad = jnp.dot(h2.astype(jnp.bfloat16), wmid[:, INTERMEDIATE:_MID_COLS],
                 preferred_element_type=jnp.float32) + bad
    ad = _gelu_exact(ad)
    ad = jnp.dot(ad.astype(jnp.bfloat16), wout[INTERMEDIATE:_OUT_ROWS, :],
                 preferred_element_type=jnp.float32) + bau

    out_ref[0] = h2 + ad


# ---------------------------- wrapper / packing --------------------------------
def _pack_params(params):
    """Pack once at load time. Head reorganization + bf16 casts happen here (free)."""
    scale = 1.0 / math.sqrt(HEAD_DIM)

    def headify_cols(w):   # (H, H) -> (NH, H, HD): split output columns per head
        return jnp.transpose(w.reshape(HIDDEN, NUM_HEADS, HEAD_DIM), (1, 0, 2))

    w_qkv = jnp.concatenate([headify_cols(params["wq"] * scale),
                             headify_cols(params["wk"]),
                             headify_cols(params["wv"])], axis=-1)          # (NH, H, 3*HD)
    b_qkv = jnp.concatenate([
        (params["bq"][0] * scale).reshape(NUM_HEADS, 1, HEAD_DIM),
        params["bk"][0].reshape(NUM_HEADS, 1, HEAD_DIM),
        params["bv"][0].reshape(NUM_HEADS, 1, HEAD_DIM)], axis=-1)          # (NH, 1, 3*HD)
    w_attn = params["wattn"].reshape(NUM_HEADS, HEAD_DIM, HIDDEN)           # (NH, HD, H)
    w_mid = jnp.concatenate([params["wi"], params["wad"]], axis=1)          # (H, 192)
    w_out = jnp.concatenate([params["wo"], params["wau"]], axis=0)          # (192, H)

    z32 = jnp.zeros((HIDDEN,), jnp.float32)
    z64 = jnp.zeros((BOTTLENECK,), jnp.float32)
    b_slab = jnp.stack([
        jnp.concatenate([params["battn"][0], params["bo"][0], params["bau"][0], z32]),
        params["bi"][0],
        jnp.concatenate([params["bad"][0], z64]),
        jnp.concatenate([params["ln1_g"][0], params["ln1_b"][0],
                         params["ln2_g"][0], params["ln2_b"][0]]),
    ], axis=0).astype(jnp.float32)                                          # (4, 128)

    bf16 = jnp.bfloat16
    return (w_qkv.astype(bf16), b_qkv.astype(jnp.float32), w_attn.astype(bf16),
            w_mid.astype(bf16), w_out.astype(bf16), b_slab)


def gpt2_layer(hidden_states, attention_mask, params):
    B, S, H = hidden_states.shape
    assert H == HIDDEN and INTERMEDIATE == 4 * HIDDEN
    assert attention_mask.shape == (B, 1, 1, S), \
        "attention_mask must be an additive mask of shape [B, 1, 1, S]"

    w_qkv, b_qkv, w_attn, w_mid, w_out, b_slab = _pack_params(params)
    pad = attention_mask.reshape(B, 1, S).astype(jnp.float32)   # per-key additive mask
    x = hidden_states.astype(jnp.float32)

    out = pl.pallas_call(
        gpt2_layer_kernel,
        out_shape=jax.ShapeDtypeStruct((B, S, H), jnp.float32),
        grid=(B,),
        in_specs=[
            pl.BlockSpec((1, S, H), lambda b: (b, 0, 0)),                    # x
            pl.BlockSpec((1, 1, S), lambda b: (b, 0, 0)),                    # padding mask
            pl.BlockSpec((NUM_HEADS, H, 3 * HEAD_DIM), lambda b: (0, 0, 0)),  # W_qkv (bf16)
            pl.BlockSpec((NUM_HEADS, 1, 3 * HEAD_DIM), lambda b: (0, 0, 0)),  # b_qkv
            pl.BlockSpec((NUM_HEADS, HEAD_DIM, H), lambda b: (0, 0, 0)),      # W_attn (bf16)
            pl.BlockSpec((H, _MID_COLS), lambda b: (0, 0)),                   # [wi|wad] (bf16)
            pl.BlockSpec((_OUT_ROWS, H), lambda b: (0, 0)),                   # [wo;wau] (bf16)
            pl.BlockSpec((4, 4 * HIDDEN), lambda b: (0, 0)),                  # bias/LN slab
        ],
        out_specs=pl.BlockSpec((1, S, H), lambda b: (b, 0, 0)),
        input_output_aliases={0: 0},
        compiler_params=pltpu.CompilerParams(dimension_semantics=("parallel",)),
    )(x, pad, w_qkv, b_qkv, w_attn, w_mid, w_out, b_slab)
    return out


# ---------------------------- params / reference -------------------------------
def init_params(key):
    keys = jax.random.split(key, 12)
    s = 0.02

    def w(k, shape):
        return (s * jax.random.normal(k, shape)).astype(jnp.float32)

    return {
        "ln1_g": jnp.ones((1, HIDDEN), jnp.float32),
        "ln1_b": jnp.zeros((1, HIDDEN), jnp.float32),
        # attention projections, stored [in, out] (== PyTorch W.T)
        "wq": w(keys[0], (HIDDEN, HIDDEN)), "bq": jnp.zeros((1, HIDDEN), jnp.float32),
        "wk": w(keys[1], (HIDDEN, HIDDEN)), "bk": jnp.zeros((1, HIDDEN), jnp.float32),
        "wv": w(keys[2], (HIDDEN, HIDDEN)), "bv": jnp.zeros((1, HIDDEN), jnp.float32),
        "wattn": w(keys[3], (HIDDEN, HIDDEN)),
        "battn": w(keys[4], (1, HIDDEN)),
        "ln2_g": jnp.ones((1, HIDDEN), jnp.float32),
        "ln2_b": jnp.zeros((1, HIDDEN), jnp.float32),
        "wi": w(keys[5], (HIDDEN, INTERMEDIATE)),
        "bi": w(keys[6], (1, INTERMEDIATE)),
        "wo": w(keys[7], (INTERMEDIATE, HIDDEN)),
        "bo": w(keys[8], (1, HIDDEN)),
        "wad": w(keys[9], (HIDDEN, BOTTLENECK)),
        "bad": jnp.zeros((1, BOTTLENECK), jnp.float32),
        "wau": w(keys[10], (BOTTLENECK, HIDDEN)),
        "bau": jnp.zeros((1, HIDDEN), jnp.float32),
    }


def gpt2_layer_reference(hidden_states, attention_mask, params):
    """Plain-JAX (f32) forward matching the PyTorch module (eval mode)."""
    B, S, H = hidden_states.shape
    x = hidden_states.astype(jnp.float32)

    def ln(v, g, b):
        mu = jnp.mean(v, axis=-1, keepdims=True)
        var = jnp.mean((v - mu) ** 2, axis=-1, keepdims=True)
        return (v - mu) / jnp.sqrt(var + LN_EPS) * g + b

    ln1 = ln(x, params["ln1_g"][0], params["ln1_b"][0])
    q = ln1 @ params["wq"] + params["bq"][0]
    k = ln1 @ params["wk"] + params["bk"][0]
    v = ln1 @ params["wv"] + params["bv"][0]

    def split(t):
        return t.reshape(B, S, NUM_HEADS, HEAD_DIM).transpose(0, 2, 1, 3)

    qh, kh, vh = split(q), split(k), split(v)
    causal = jnp.where(jnp.tril(jnp.ones((S, S))) == 1, 0.0, MASK_VAL)
    m = jnp.maximum(attention_mask + causal[None, None], MASK_VAL)     # (B,1,S,S)
    s = jnp.einsum('bhqd,bhkd->bhqk', qh, kh) / math.sqrt(HEAD_DIM) + m
    p = jax.nn.softmax(s, axis=-1)
    ctx = jnp.einsum('bhqk,bhkd->bhqd', p, vh).transpose(0, 2, 1, 3).reshape(B, S, H)
    h1 = x + (ctx @ params["wattn"] + params["battn"][0])
    ln2 = ln(h1, params["ln2_g"][0], params["ln2_b"][0])
    ff = _gelu_exact(ln2 @ params["wi"] + params["bi"][0])
    ff = ff @ params["wo"] + params["bo"][0]
    h2 = h1 + ff
    ad = _gelu_exact(h2 @ params["wad"] + params["bad"][0])
    ad = ad @ params["wau"] + params["bau"][0]
    return h2 + ad


if __name__ == "__main__":
    key = jax.random.PRNGKey(0)
    k_x, k_p = jax.random.split(key)

    hidden_states = jax.random.normal(k_x, (BATCH, SEQ, HIDDEN), dtype=jnp.float32)
    attention_mask = jnp.zeros((BATCH, 1, 1, SEQ), dtype=jnp.float32)   # additive, no padding
    params = init_params(k_p)

    # reference computed first (f32 end to end)
    ref = gpt2_layer_reference(hidden_states, attention_mask, params)

    out = gpt2_layer(hidden_states, attention_mask, params)
    jax.block_until_ready(out)
    assert out.shape == (BATCH, SEQ, HIDDEN)
    assert bool(jnp.all(jnp.isfinite(out)))

    # accuracy budget: bf16 MXU operands (~0.4% rel) + EUP approx reciprocal in softmax
    assert float(jnp.max(jnp.abs(out - ref))) < 5e-2
    print("KERNEL_OK")
</pallas_src>

<mosaic_0001>
module attributes {stable_mosaic.version = 11 : i64} {
  func.func @gpt2_layer_kernel(%arg0: i32, %arg1: memref<1x8x32xf32, #tpu.memory_space<vmem>>, %arg2: memref<1x1x8xf32, #tpu.memory_space<vmem>>, %arg3: memref<4x32x24xbf16, #tpu.memory_space<vmem>>, %arg4: memref<4x1x24xf32, #tpu.memory_space<vmem>>, %arg5: memref<4x8x32xbf16, #tpu.memory_space<vmem>>, %arg6: memref<32x192xbf16, #tpu.memory_space<vmem>>, %arg7: memref<192x32xbf16, #tpu.memory_space<vmem>>, %arg8: memref<4x128xf32, #tpu.memory_space<vmem>>, %arg9: memref<1x8x32xf32, #tpu.memory_space<vmem>>) attributes {dimension_semantics = [#tpu.dimension_semantics<parallel>], iteration_bounds = array<i64: 2>, scalar_prefetch = 0 : i64, scratch_operands = 0 : i64, tpu.core_type = #tpu.core_type<tc>, window_params = [{transform_indices = @transform_0, window_bounds = array<i64: 1, 8, 32>}, {transform_indices = @transform_1, window_bounds = array<i64: 1, 1, 8>}, {pipeline_mode = #tpu.pipeline_mode<synchronous>, transform_indices = @transform_2, window_bounds = array<i64: 4, 32, 24>}, {pipeline_mode = #tpu.pipeline_mode<synchronous>, transform_indices = @transform_3, window_bounds = array<i64: 4, 1, 24>}, {pipeline_mode = #tpu.pipeline_mode<synchronous>, transform_indices = @transform_4, window_bounds = array<i64: 4, 8, 32>}, {pipeline_mode = #tpu.pipeline_mode<synchronous>, transform_indices = @transform_5, window_bounds = array<i64: 32, 192>}, {pipeline_mode = #tpu.pipeline_mode<synchronous>, transform_indices = @transform_6, window_bounds = array<i64: 192, 32>}, {pipeline_mode = #tpu.pipeline_mode<synchronous>, transform_indices = @transform_7, window_bounds = array<i64: 4, 128>}, {transform_indices = @transform_8, window_bounds = array<i64: 1, 8, 32>}]} {
    %c0 = arith.constant 0 : index
    %c0_0 = arith.constant 0 : index
    %c0_1 = arith.constant 0 : index
    %0 = vector.load %arg1[%c0, %c0_0, %c0_1] : memref<1x8x32xf32, #tpu.memory_space<vmem>>, vector<1x8x32xf32>
    %1 = vector.shape_cast %0 : vector<1x8x32xf32> to vector<8x32xf32>
    %c0_2 = arith.constant 0 : index
    %c0_3 = arith.constant 0 : index
    %c0_4 = arith.constant 0 : index
    %2 = vector.load %arg2[%c0_2, %c0_3, %c0_4] : memref<1x1x8xf32, #tpu.memory_space<vmem>>, vector<1x1x8xf32>
    %3 = vector.shape_cast %2 : vector<1x1x8xf32> to vector<1x8xf32>
    %c0_5 = arith.constant 0 : index
    %c0_6 = arith.constant 0 : index
    %4 = vector.load %arg8[%c0_5, %c0_6] : memref<4x128xf32, #tpu.memory_space<vmem>>, vector<4x128xf32>
    %5 = vector.extract_strided_slice %4 {offsets = [0, 0], sizes = [1, 32], strides = [1, 1]} : vector<4x128xf32> to vector<1x32xf32>
    %6 = vector.extract_strided_slice %4 {offsets = [0, 32], sizes = [1, 32], strides = [1, 1]} : vector<4x128xf32> to vector<1x32xf32>
    %7 = vector.extract_strided_slice %4 {offsets = [0, 64], sizes = [1, 32], strides = [1, 1]} : vector<4x128xf32> to vector<1x32xf32>
    %8 = vector.extract_strided_slice %4 {offsets = [1, 0], sizes = [1, 128], strides = [1, 1]} : vector<4x128xf32> to vector<1x128xf32>
    %9 = vector.extract_strided_slice %4 {offsets = [2, 0], sizes = [1, 64], strides = [1, 1]} : vector<4x128xf32> to vector<1x64xf32>
    %10 = vector.extract_strided_slice %4 {offsets = [3, 0], sizes = [1, 32], strides = [1, 1]} : vector<4x128xf32> to vector<1x32xf32>
    %11 = vector.extract_strided_slice %4 {offsets = [3, 32], sizes = [1, 32], strides = [1, 1]} : vector<4x128xf32> to vector<1x32xf32>
    %12 = vector.extract_strided_slice %4 {offsets = [3, 64], sizes = [1, 32], strides = [1, 1]} : vector<4x128xf32> to vector<1x32xf32>
    %13 = vector.extract_strided_slice %4 {offsets = [3, 96], sizes = [1, 32], strides = [1, 1]} : vector<4x128xf32> to vector<1x32xf32>
    %cst = arith.constant dense<0.000000e+00> : vector<8xf32>
    %14 = vector.multi_reduction <add>, %1, %cst [1] : vector<8x32xf32> to vector<8xf32>
    %15 = vector.shape_cast %14 : vector<8xf32> to vector<8x1xf32>
    %cst_7 = arith.constant 3.200000e+01 : f32
    %16 = vector.broadcast %cst_7 : f32 to vector<8x1xf32>
    %17 = arith.divf %15, %16 : vector<8x1xf32>
    %18 = vector.broadcast %17 : vector<8x1xf32> to vector<8x32xf32>
    %19 = arith.subf %1, %18 : vector<8x32xf32>
    %20 = arith.mulf %19, %19 : vector<8x32xf32>
    %cst_8 = arith.constant dense<0.000000e+00> : vector<8xf32>
    %21 = vector.multi_reduction <add>, %20, %cst_8 [1] : vector<8x32xf32> to vector<8xf32>
    %22 = vector.shape_cast %21 : vector<8xf32> to vector<8x1xf32>
    %cst_9 = arith.constant 3.200000e+01 : f32
    %23 = vector.broadcast %cst_9 : f32 to vector<8x1xf32>
    %24 = arith.divf %22, %23 : vector<8x1xf32>
    %25 = vector.broadcast %17 : vector<8x1xf32> to vector<8x32xf32>
    %26 = arith.subf %1, %25 : vector<8x32xf32>
    %cst_10 = arith.constant 9.99999974E-6 : f32
    %27 = vector.broadcast %cst_10 : f32 to vector<8x1xf32>
    %28 = arith.addf %24, %27 : vector<8x1xf32>
    %29 = math.rsqrt %28 : vector<8x1xf32>
    %30 = vector.broadcast %29 : vector<8x1xf32> to vector<8x32xf32>
    %31 = arith.mulf %26, %30 : vector<8x32xf32>
    %32 = vector.broadcast %10 : vector<1x32xf32> to vector<8x32xf32>
    %33 = arith.mulf %31, %32 : vector<8x32xf32>
    %34 = vector.broadcast %11 : vector<1x32xf32> to vector<8x32xf32>
    %35 = arith.addf %33, %34 : vector<8x32xf32>
    %36 = arith.truncf %35 : vector<8x32xf32> to vector<8x32xbf16>
    %37 = vector.shape_cast %36 : vector<8x32xbf16> to vector<1x8x32xbf16>
    %38 = vector.broadcast %37 : vector<1x8x32xbf16> to vector<4x8x32xbf16>
    %c0_11 = arith.constant 0 : index
    %c0_12 = arith.constant 0 : index
    %c0_13 = arith.constant 0 : index
    %39 = vector.load %arg3[%c0_11, %c0_12, %c0_13] : memref<4x32x24xbf16, #tpu.memory_space<vmem>>, vector<4x32x24xbf16>
    "tpu.trace_start"() <{level = 10 : i32, message = "hse,hef->hsf"}> : () -> ()
    %cst_14 = arith.constant dense<0.000000e+00> : vector<4x8x24xf32>
    %40 = tpu.matmul %38, %39, %cst_14 {dimension_numbers = #tpu.dot_dimension_numbers<[2], [1], [1], [2], [0, 0, 0, 1, 1, 2], [0], [0]>} : vector<4x8x32xbf16>, vector<4x32x24xbf16>, vector<4x8x24xf32> -> vector<4x8x24xf32>
    "tpu.trace_stop"() : () -> ()
    %c0_15 = arith.constant 0 : index
    %c0_16 = arith.constant 0 : index
    %c0_17 = arith.constant 0 : index
    %41 = vector.load %arg4[%c0_15, %c0_16, %c0_17] : memref<4x1x24xf32, #tpu.memory_space<vmem>>, vector<4x1x24xf32>
    %42 = vector.broadcast %41 : vector<4x1x24xf32> to vector<4x8x24xf32>
    %43 = arith.addf %40, %42 : vector<4x8x24xf32>
    %44 = vector.extract_strided_slice %43 {offsets = [0, 0, 0], sizes = [4, 8, 8], strides = [1, 1, 1]} : vector<4x8x24xf32> to vector<4x8x8xf32>
    %45 = vector.extract_strided_slice %43 {offsets = [0, 0, 8], sizes = [4, 8, 8], strides = [1, 1, 1]} : vector<4x8x24xf32> to vector<4x8x8xf32>
    %46 = vector.extract_strided_slice %43 {offsets = [0, 0, 16], sizes = [4, 8, 8], strides = [1, 1, 1]} : vector<4x8x24xf32> to vector<4x8x8xf32>
    %47 = arith.truncf %44 : vector<4x8x8xf32> to vector<4x8x8xbf16>
    %48 = arith.truncf %45 : vector<4x8x8xf32> to vector<4x8x8xbf16>
    "tpu.trace_start"() <{level = 10 : i32, message = "hqd,hkd->hqk"}> : () -> ()
    %cst_18 = arith.constant dense<0.000000e+00> : vector<4x8x8xf32>
    %49 = tpu.matmul %47, %48, %cst_18 {dimension_numbers = #tpu.dot_dimension_numbers<[2], [2], [1], [1], [0, 0, 0, 1, 1, 1], [0], [0]>} : vector<4x8x8xbf16>, vector<4x8x8xbf16>, vector<4x8x8xf32> -> vector<4x8x8xf32>
    "tpu.trace_stop"() : () -> ()
    %50 = vector.shape_cast %3 : vector<1x8xf32> to vector<1x1x8xf32>
    %51 = vector.broadcast %50 : vector<1x1x8xf32> to vector<4x8x8xf32>
    %52 = arith.addf %49, %51 : vector<4x8x8xf32>
    %53 = tpu.iota {dimensions = array<i32: 0>} : vector<8x8xi32>
    %54 = tpu.iota {dimensions = array<i32: 1>} : vector<8x8xi32>
    %55 = arith.cmpi sge, %53, %54 : vector<8x8xi32>
    %56 = vector.shape_cast %55 : vector<8x8xi1> to vector<1x8x8xi1>
    %cst_19 = arith.constant -3.40282347E+38 : f32
    %57 = vector.shape_cast %56 : vector<1x8x8xi1> to vector<1x8x8xi1>
    %58 = vector.broadcast %57 : vector<1x8x8xi1> to vector<4x8x8xi1>
    %59 = vector.broadcast %cst_19 : f32 to vector<4x8x8xf32>
    %60 = arith.select %58, %52, %59 : vector<4x8x8xi1>, vector<4x8x8xf32>
    %cst_20 = arith.constant dense<0xFF800000> : vector<4x8xf32>
    %61 = vector.multi_reduction <maximumf>, %60, %cst_20 [2] : vector<4x8x8xf32> to vector<4x8xf32>
    %62 = vector.shape_cast %61 : vector<4x8xf32> to vector<4x8x1xf32>
    %63 = vector.broadcast %62 : vector<4x8x1xf32> to vector<4x8x8xf32>
    %64 = arith.subf %60, %63 : vector<4x8x8xf32>
    %65 = math.exp %64 : vector<4x8x8xf32>
    %cst_21 = arith.constant dense<0.000000e+00> : vector<4x8xf32>
    %66 = vector.multi_reduction <add>, %65, %cst_21 [2] : vector<4x8x8xf32> to vector<4x8xf32>
    %67 = vector.shape_cast %66 : vector<4x8xf32> to vector<4x8x1xf32>
    %68 = tpu.reciprocal %67 {approx = true} : vector<4x8x1xf32> -> vector<4x8x1xf32>
    %69 = vector.broadcast %68 : vector<4x8x1xf32> to vector<4x8x8xf32>
    %70 = arith.mulf %65, %69 : vector<4x8x8xf32>
    %71 = arith.truncf %70 : vector<4x8x8xf32> to vector<4x8x8xbf16>
    %72 = arith.truncf %46 : vector<4x8x8xf32> to vector<4x8x8xbf16>
    "tpu.trace_start"() <{level = 10 : i32, message = "hqk,hkd->hqd"}> : () -> ()
    %cst_22 = arith.constant dense<0.000000e+00> : vector<4x8x8xf32>
    %73 = tpu.matmul %71, %72, %cst_22 {dimension_numbers = #tpu.dot_dimension_numbers<[2], [1], [1], [2], [0, 0, 0, 1, 1, 2], [0], [0]>} : vector<4x8x8xbf16>, vector<4x8x8xbf16>, vector<4x8x8xf32> -> vector<4x8x8xf32>
    "tpu.trace_stop"() : () -> ()
    %74 = arith.truncf %73 : vector<4x8x8xf32> to vector<4x8x8xbf16>
    %c0_23 = arith.constant 0 : index
    %c0_24 = arith.constant 0 : index
    %c0_25 = arith.constant 0 : index
    %75 = vector.load %arg5[%c0_23, %c0_24, %c0_25] : memref<4x8x32xbf16, #tpu.memory_space<vmem>>, vector<4x8x32xbf16>
    "tpu.trace_start"() <{level = 10 : i32, message = "hqd,hdo->hqo"}> : () -> ()
    %cst_26 = arith.constant dense<0.000000e+00> : vector<4x8x32xf32>
    %76 = tpu.matmul %74, %75, %cst_26 {dimension_numbers = #tpu.dot_dimension_numbers<[2], [1], [1], [2], [0, 0, 0, 1, 1, 2], [0], [0]>} : vector<4x8x8xbf16>, vector<4x8x32xbf16>, vector<4x8x32xf32> -> vector<4x8x32xf32>
    "tpu.trace_stop"() : () -> ()
    %cst_27 = arith.constant dense<0.000000e+00> : vector<8x32xf32>
    %77 = vector.multi_reduction <add>, %76, %cst_27 [0] : vector<4x8x32xf32> to vector<8x32xf32>
    %78 = arith.addf %1, %77 : vector<8x32xf32>
    %79 = vector.broadcast %5 : vector<1x32xf32> to vector<8x32xf32>
    %80 = arith.addf %78, %79 : vector<8x32xf32>
    %cst_28 = arith.constant dense<0.000000e+00> : vector<8xf32>
    %81 = vector.multi_reduction <add>, %80, %cst_28 [1] : vector<8x32xf32> to vector<8xf32>
    %82 = vector.shape_cast %81 : vector<8xf32> to vector<8x1xf32>
    %cst_29 = arith.constant 3.200000e+01 : f32
    %83 = vector.broadcast %cst_29 : f32 to vector<8x1xf32>
    %84 = arith.divf %82, %83 : vector<8x1xf32>
    %85 = vector.broadcast %84 : vector<8x1xf32> to vector<8x32xf32>
    %86 = arith.subf %80, %85 : vector<8x32xf32>
    %87 = arith.mulf %86, %86 : vector<8x32xf32>
    %cst_30 = arith.constant dense<0.000000e+00> : vector<8xf32>
    %88 = vector.multi_reduction <add>, %87, %cst_30 [1] : vector<8x32xf32> to vector<8xf32>
    %89 = vector.shape_cast %88 : vector<8xf32> to vector<8x1xf32>
    %cst_31 = arith.constant 3.200000e+01 : f32
    %90 = vector.broadcast %cst_31 : f32 to vector<8x1xf32>
    %91 = arith.divf %89, %90 : vector<8x1xf32>
    %92 = vector.broadcast %84 : vector<8x1xf32> to vector<8x32xf32>
    %93 = arith.subf %80, %92 : vector<8x32xf32>
    %cst_32 = arith.constant 9.99999974E-6 : f32
    %94 = vector.broadcast %cst_32 : f32 to vector<8x1xf32>
    %95 = arith.addf %91, %94 : vector<8x1xf32>
    %96 = math.rsqrt %95 : vector<8x1xf32>
    %97 = vector.broadcast %96 : vector<8x1xf32> to vector<8x32xf32>
    %98 = arith.mulf %93, %97 : vector<8x32xf32>
    %99 = vector.broadcast %12 : vector<1x32xf32> to vector<8x32xf32>
    %100 = arith.mulf %98, %99 : vector<8x32xf32>
    %101 = vector.broadcast %13 : vector<1x32xf32> to vector<8x32xf32>
    %102 = arith.addf %100, %101 : vector<8x32xf32>
    %c0_33 = arith.constant 0 : index
    %c0_34 = arith.constant 0 : index
    %103 = vector.load %arg6[%c0_33, %c0_34] : memref<32x192xbf16, #tpu.memory_space<vmem>>, vector<32x192xbf16>
    %c0_35 = arith.constant 0 : index
    %c0_36 = arith.constant 0 : index
    %104 = vector.load %arg7[%c0_35, %c0_36] : memref<192x32xbf16, #tpu.memory_space<vmem>>, vector<192x32xbf16>
    %105 = arith.truncf %102 : vector<8x32xf32> to vector<8x32xbf16>
    %106 = vector.extract_strided_slice %103 {offsets = [0, 0], sizes = [32, 128], strides = [1, 1]} : vector<32x192xbf16> to vector<32x128xbf16>
    %cst_37 = arith.constant dense<0.000000e+00> : vector<8x128xf32>
    %107 = tpu.matmul %105, %106, %cst_37 {dimension_numbers = #tpu.dot_dimension_numbers<[1], [0], [0], [1], [0, 0, 1, 1], [], []>} : vector<8x32xbf16>, vector<32x128xbf16>, vector<8x128xf32> -> vector<8x128xf32>
    %108 = vector.broadcast %8 : vector<1x128xf32> to vector<8x128xf32>
    %109 = arith.addf %107, %108 : vector<8x128xf32>
    %cst_38 = arith.constant 5.000000e-01 : f32
    %110 = vector.broadcast %cst_38 : f32 to vector<8x128xf32>
    %111 = arith.mulf %110, %109 : vector<8x128xf32>
    %cst_39 = arith.constant 0.707106769 : f32
    %112 = vector.broadcast %cst_39 : f32 to vector<8x128xf32>
    %113 = arith.mulf %109, %112 : vector<8x128xf32>
    %114 = math.erf %113 : vector<8x128xf32>
    %cst_40 = arith.constant 1.000000e+00 : f32
    %115 = vector.broadcast %cst_40 : f32 to vector<8x128xf32>
    %116 = arith.addf %115, %114 : vector<8x128xf32>
    %117 = arith.mulf %111, %116 : vector<8x128xf32>
    %118 = arith.truncf %117 : vector<8x128xf32> to vector<8x128xbf16>
    %119 = vector.extract_strided_slice %104 {offsets = [0, 0], sizes = [128, 32], strides = [1, 1]} : vector<192x32xbf16> to vector<128x32xbf16>
    %cst_41 = arith.constant dense<0.000000e+00> : vector<8x32xf32>
    %120 = tpu.matmul %118, %119, %cst_41 {dimension_numbers = #tpu.dot_dimension_numbers<[1], [0], [0], [1], [0, 0, 1, 1], [], []>} : vector<8x128xbf16>, vector<128x32xbf16>, vector<8x32xf32> -> vector<8x32xf32>
    %121 = vector.broadcast %6 : vector<1x32xf32> to vector<8x32xf32>
    %122 = arith.addf %120, %121 : vector<8x32xf32>
    %123 = arith.addf %80, %122 : vector<8x32xf32>
    %124 = arith.truncf %123 : vector<8x32xf32> to vector<8x32xbf16>
    %125 = vector.extract_strided_slice %103 {offsets = [0, 128], sizes = [32, 64], strides = [1, 1]} : vector<32x192xbf16> to vector<32x64xbf16>
    %cst_42 = arith.constant dense<0.000000e+00> : vector<8x64xf32>
    %126 = tpu.matmul %124, %125, %cst_42 {dimension_numbers = #tpu.dot_dimension_numbers<[1], [0], [0], [1], [0, 0, 1, 1], [], []>} : vector<8x32xbf16>, vector<32x64xbf16>, vector<8x64xf32> -> vector<8x64xf32>
    %127 = vector.broadcast %9 : vector<1x64xf32> to vector<8x64xf32>
    %128 = arith.addf %126, %127 : vector<8x64xf32>
    %cst_43 = arith.constant 5.000000e-01 : f32
    %129 = vector.broadcast %cst_43 : f32 to vector<8x64xf32>
    %130 = arith.mulf %129, %128 : vector<8x64xf32>
    %cst_44 = arith.constant 0.707106769 : f32
    %131 = vector.broadcast %cst_44 : f32 to vector<8x64xf32>
    %132 = arith.mulf %128, %131 : vector<8x64xf32>
    %133 = math.erf %132 : vector<8x64xf32>
    %cst_45 = arith.constant 1.000000e+00 : f32
    %134 = vector.broadcast %cst_45 : f32 to vector<8x64xf32>
    %135 = arith.addf %134, %133 : vector<8x64xf32>
    %136 = arith.mulf %130, %135 : vector<8x64xf32>
    %137 = arith.truncf %136 : vector<8x64xf32> to vector<8x64xbf16>
    %138 = vector.extract_strided_slice %104 {offsets = [128, 0], sizes = [64, 32], strides = [1, 1]} : vector<192x32xbf16> to vector<64x32xbf16>
    %cst_46 = arith.constant dense<0.000000e+00> : vector<8x32xf32>
    %139 = tpu.matmul %137, %138, %cst_46 {dimension_numbers = #tpu.dot_dimension_numbers<[1], [0], [0], [1], [0, 0, 1, 1], [], []>} : vector<8x64xbf16>, vector<64x32xbf16>, vector<8x32xf32> -> vector<8x32xf32>
    %140 = vector.broadcast %7 : vector<1x32xf32> to vector<8x32xf32>
    %141 = arith.addf %139, %140 : vector<8x32xf32>
    %142 = arith.addf %123, %141 : vector<8x32xf32>
    %c0_47 = arith.constant 0 : index
    %c0_48 = arith.constant 0 : index
    %c0_49 = arith.constant 0 : index
    %143 = vector.load %arg9[%c0_47, %c0_48, %c0_49] : memref<1x8x32xf32, #tpu.memory_space<vmem>>, vector<1x8x32xf32>
    %144 = vector.shape_cast %143 : vector<1x8x32xf32> to vector<8x32xf32>
    %145 = vector.shape_cast %142 : vector<8x32xf32> to vector<1x8x32xf32>
    tpu.vector_store %arg9[%c0_47, %c0_48, %c0_49], %145 {strides = array<i32>} : memref<1x8x32xf32, #tpu.memory_space<vmem>>, vector<1x8x32xf32>,
    return
  }
  func.func @transform_0(%arg0: i32) -> (i32, i32, i32) {
    %c0_i32 = arith.constant 0 : i32
    %c0_i32_0 = arith.constant 0 : i32
    %c0_i32_1 = arith.constant 0 : i32
    return %arg0, %c0_i32, %c0_i32_0 : i32, i32, i32
  }
  func.func @transform_1(%arg0: i32) -> (i32, i32, i32) {
    %c0_i32 = arith.constant 0 : i32
    %c0_i32_0 = arith.constant 0 : i32
    %c0_i32_1 = arith.constant 0 : i32
    return %arg0, %c0_i32, %c0_i32_0 : i32, i32, i32
  }
  func.func @transform_2(%arg0: i32) -> (i32, i32, i32) {
    %c0_i32 = arith.constant 0 : i32
    %c0_i32_0 = arith.constant 0 : i32
    %c0_i32_1 = arith.constant 0 : i32
    %c0_i32_2 = arith.constant 0 : i32
    return %c0_i32, %c0_i32_0, %c0_i32_1 : i32, i32, i32
  }
  func.func @transform_3(%arg0: i32) -> (i32, i32, i32) {
    %c0_i32 = arith.constant 0 : i32
    %c0_i32_0 = arith.constant 0 : i32
    %c0_i32_1 = arith.constant 0 : i32
    %c0_i32_2 = arith.constant 0 : i32
    return %c0_i32, %c0_i32_0, %c0_i32_1 : i32, i32, i32
  }
  func.func @transform_4(%arg0: i32) -> (i32, i32, i32) {
    %c0_i32 = arith.constant 0 : i32
    %c0_i32_0 = arith.constant 0 : i32
    %c0_i32_1 = arith.constant 0 : i32
    %c0_i32_2 = arith.constant 0 : i32
    return %c0_i32, %c0_i32_0, %c0_i32_1 : i32, i32, i32
  }
  func.func @transform_5(%arg0: i32) -> (i32, i32) {
    %c0_i32 = arith.constant 0 : i32
    %c0_i32_0 = arith.constant 0 : i32
    %c0_i32_1 = arith.constant 0 : i32
    return %c0_i32, %c0_i32_0 : i32, i32
  }
  func.func @transform_6(%arg0: i32) -> (i32, i32) {
    %c0_i32 = arith.constant 0 : i32
    %c0_i32_0 = arith.constant 0 : i32
    %c0_i32_1 = arith.constant 0 : i32
    return %c0_i32, %c0_i32_0 : i32, i32
  }
  func.func @transform_7(%arg0: i32) -> (i32, i32) {
    %c0_i32 = arith.constant 0 : i32
    %c0_i32_0 = arith.constant 0 : i32
    %c0_i32_1 = arith.constant 0 : i32
    return %c0_i32, %c0_i32_0 : i32, i32
  }
  func.func @transform_8(%arg0: i32) -> (i32, i32, i32) {
    %c0_i32 = arith.constant 0 : i32
    %c0_i32_0 = arith.constant 0 : i32
    %c0_i32_1 = arith.constant 0 : i32
    return %arg0, %c0_i32, %c0_i32_0 : i32, i32, i32
  }
}

</mosaic_0001>

<llo_original>
// kernel: tpu_custom_call.1
$region0: #{tpu_custom_call.1}
  #allocation0 [shape = 'u32[]', space=smem, size = 0x4, offset = 0x4, fixed_abs, tag = 'smem constant byte address 0x4 - core index']
  #allocation1 [shape = 'u32[144,128]{1,0:T(1,128)}', space=vmem, size = 0x12000, scoped, tag = 'internal scratch']
  %s0 = inlined_call_operand.hbm [shape: f32[2,8,32], index: 0, kind: input, shape index: {}, may-alias: {0,8}]
  %s1 = inlined_call_operand.vmem [shape: f32[2,1,8], index: 1, kind: input, shape index: {}]
  %s2 = inlined_call_operand.vmem [shape: bf16[4,32,24], index: 2, kind: input, shape index: {}]
  %s3 = inlined_call_operand.vmem [shape: f32[4,1,24], index: 3, kind: input, shape index: {}]
  %s4 = inlined_call_operand.vmem [shape: bf16[4,8,32], index: 4, kind: input, shape index: {}]
  %s5 = inlined_call_operand.vmem [shape: bf16[32,192], index: 5, kind: input, shape index: {}]
  %s6 = inlined_call_operand.vmem [shape: bf16[192,32], index: 6, kind: input, shape index: {}]
  %s7 = inlined_call_operand.vmem [shape: f32[4,128], index: 7, kind: input, shape index: {}]
  %s8 = inlined_call_operand.hbm [shape: f32[2,8,32], index: 8, kind: output, shape index: {}, may-alias: {0,8}]
  %s9 = sld [smem:[#allocation0]]
  $region69: #{tpu_custom_call.1} parent=0
    _
  %s11 = ssub.s32 1, %s9
  %s12 = scalar_select 0, %s11, %s9
  $region1: #{tpu_custom_call.1} parent=0
    #allocation2 [shape = 'u8[8192]{0}', space=vmem, size = 0x2000, scoped, tag = 'input window, operand 0']
    #allocation3 [shape = 's32[2]{0}', space=sflag, size = 0x8, scoped, tag = 'scoped memory for tpu_custom_call.1']
    #allocation4 [shape = 's32[2]{0}', space=sflag, size = 0x8, scoped, tag = 'scoped memory for tpu_custom_call.1']
    #allocation5 [shape = 'u8[8192]{0}', space=vmem, size = 0x2000, scoped, tag = 'output window, operand 0']
    %13 = vsyncpa [#allocation3], 0
    %s14 = scalar_lea.sflag [#allocation3], 1
    %15 = vsyncpa %s14, 0
    %16 = vsyncpa [#allocation4], 0
    %s17 = scalar_lea.sflag [#allocation4], 1
    %18 = vsyncpa %s17, 0
    loop: start=0, step=1, limit=4
    $region2: #{tpu_custom_call.1} parent=1 // loop_pre_header
      _
    $region3: #{tpu_custom_call.1} parent=1 // loop_header
      %s20 = sphi 0, %s24
      %p21 = scmp.ge.s32.totalorder %s20, 4
      %s30 = sphi 0, %s32
      %s33 = sphi 0, %s30
      %s34 = sphi 0, %s33
      %s50 = sphi 0, %s34
      %s56 = sphi 0, %s58
      %s59 = sphi 0, %s56
      %s60 = sphi 0, %s59
      %s76 = sphi 0, %s60
      %s80 = sphi 0, %s80
      %s82 = sphi 0, %s80
      %s83 = sphi 0, %s82
      %s97 = sphi 0, %s83
      %s101 = sphi 0, %s101
      %s103 = sphi 0, %s101
      %s104 = sphi 0, %s103
      %s118 = sphi 0, %s104
      %s122 = sphi 0, %s122
      %s124 = sphi 0, %s122
      %s125 = sphi 0, %s124
      %s139 = sphi 0, %s125
      %s143 = sphi 0, %s143
      %s145 = sphi 0, %s143
      %s146 = sphi 0, %s145
      %s160 = sphi 0, %s146
      %s164 = sphi 0, %s164
      %s166 = sphi 0, %s164
      %s167 = sphi 0, %s166
      %s181 = sphi 0, %s167
      %s185 = sphi 0, %s185
      %s187 = sphi 0, %s185
      %s188 = sphi 0, %s187
      %s202 = sphi 0, %s188
      %s208 = sphi 0, %s210
      %s211 = sphi 0, %s208
      %s212 = sphi 0, %s211
      %s228 = sphi 0, %s212
    $region4: #{tpu_custom_call.1} parent=1 // loop_header_branch
      %23 = sbr.rel (%p21) target = $region8
    $region5: #{tpu_custom_call.1} parent=1 // loop_body
      %s25 = ssub.s32 %s20, 1
      %s26 = ssub.s32 %s20, 2
      %s27 = sadd.s32 %s20, 1
      %s28 = ssub.s32 %s20, %s27
      %p29 = scmp.eq.s32.totalorder %s28, 0
      %s31 = sadd.s32 %s30, 1
      %s32 = scalar_select %p29, %s30, %s31
      %p35 = pneg %p29
      %p36 = scmp.eq.s32.totalorder %s20, 1
      %p37 = por %p35, %p36
      %p38 = scmp.ne.s32.totalorder %s30, %s33
      %p39 = scmp.eq.s32.totalorder %s20, 0
      %p40 = por %p38, %p39
      %p41 = scmp.ne.s32.totalorder %s30, %s33
      %p42 = scmp.eq.s32.totalorder %s25, 1
      %p43 = por %p41, %p42
      %p44 = scmp.ne.s32.totalorder %s33, %s34
      %p45 = scmp.eq.s32.totalorder %s25, 0
      %p46 = por %p44, %p45
      %p47 = scmp.ne.s32.totalorder %s33, %s34
      %p48 = scmp.eq.s32.totalorder %s26, 1
      %p49 = por %p47, %p48
      %p51 = scmp.ne.s32.totalorder %s34, %s50
      %p52 = scmp.eq.s32.totalorder %s26, 0
      %p53 = por %p51, %p52
      %s54 = ssub.s32 %s20, %s27
      %p55 = scmp.eq.s32.totalorder %s54, 0
      %s57 = sadd.s32 %s56, 1
      %s58 = scalar_select %p55, %s56, %s57
      %p61 = pneg %p55
      %p62 = scmp.eq.s32.totalorder %s20, 1
      %p63 = por %p61, %p62
      %p64 = scmp.ne.s32.totalorder %s56, %s59
      %p65 = scmp.eq.s32.totalorder %s20, 0
      %p66 = por %p64, %p65
      %p67 = scmp.ne.s32.totalorder %s56, %s59
      %p68 = scmp.eq.s32.totalorder %s25, 1
      %p69 = por %p67, %p68
      %p70 = scmp.ne.s32.totalorder %s59, %s60
      %p71 = scmp.eq.s32.totalorder %s25, 0
      %p72 = por %p70, %p71
      %p73 = scmp.ne.s32.totalorder %s59, %s60
      %p74 = scmp.eq.s32.totalorder %s26, 1
      %p75 = por %p73, %p74
      %p77 = scmp.ne.s32.totalorder %s60, %s76
      %p78 = scmp.eq.s32.totalorder %s26, 0
      %p79 = por %p77, %p78
      %s81 = sadd.s32 %s80, 1
      %p84 = scmp.eq.s32.totalorder %s20, 1
      %p85 = scmp.ne.s32.totalorder %s80, %s82
      %p86 = scmp.eq.s32.totalorder %s20, 0
      %p87 = por %p85, %p86
      %p88 = scmp.ne.s32.totalorder %s80, %s82
      %p89 = scmp.eq.s32.totalorder %s25, 1
      %p90 = por %p88, %p89
      %p91 = scmp.ne.s32.totalorder %s82, %s83
      %p92 = scmp.eq.s32.totalorder %s25, 0
      %p93 = por %p91, %p92
      %p94 = scmp.ne.s32.totalorder %s82, %s83
      %p95 = scmp.eq.s32.totalorder %s26, 1
      %p96 = por %p94, %p95
      %p98 = scmp.ne.s32.totalorder %s83, %s97
      %p99 = scmp.eq.s32.totalorder %s26, 0
      %p100 = por %p98, %p99
      %s102 = sadd.s32 %s101, 1
      %p105 = scmp.eq.s32.totalorder %s20, 1
      %p106 = scmp.ne.s32.totalorder %s101, %s103
      %p107 = scmp.eq.s32.totalorder %s20, 0
      %p108 = por %p106, %p107
      %p109 = scmp.ne.s32.totalorder %s101, %s103
      %p110 = scmp.eq.s32.totalorder %s25, 1
      %p111 = por %p109, %p110
      %p112 = scmp.ne.s32.totalorder %s103, %s104
      %p113 = scmp.eq.s32.totalorder %s25, 0
      %p114 = por %p112, %p113
      %p115 = scmp.ne.s32.totalorder %s103, %s104
      %p116 = scmp.eq.s32.totalorder %s26, 1
      %p117 = por %p115, %p116
      %p119 = scmp.ne.s32.totalorder %s104, %s118
      %p120 = scmp.eq.s32.totalorder %s26, 0
      %p121 = por %p119, %p120
      %s123 = sadd.s32 %s122, 1
      %p126 = scmp.eq.s32.totalorder %s20, 1
      %p127 = scmp.ne.s32.totalorder %s122, %s124
      %p128 = scmp.eq.s32.totalorder %s20, 0
      %p129 = por %p127, %p128
      %p130 = scmp.ne.s32.totalorder %s122, %s124
      %p131 = scmp.eq.s32.totalorder %s25, 1
      %p132 = por %p130, %p131
      %p133 = scmp.ne.s32.totalorder %s124, %s125
      %p134 = scmp.eq.s32.totalorder %s25, 0
      %p135 = por %p133, %p134
      %p136 = scmp.ne.s32.totalorder %s124, %s125
      %p137 = scmp.eq.s32.totalorder %s26, 1
      %p138 = por %p136, %p137
      %p140 = scmp.ne.s32.totalorder %s125, %s139
      %p141 = scmp.eq.s32.totalorder %s26, 0
      %p142 = por %p140, %p141
      %s144 = sadd.s32 %s143, 1
      %p147 = scmp.eq.s32.totalorder %s20, 1
      %p148 = scmp.ne.s32.totalorder %s143, %s145
      %p149 = scmp.eq.s32.totalorder %s20, 0
      %p150 = por %p148, %p149
      %p151 = scmp.ne.s32.totalorder %s143, %s145
      %p152 = scmp.eq.s32.totalorder %s25, 1
      %p153 = por %p151, %p152
      %p154 = scmp.ne.s32.totalorder %s145, %s146
      %p155 = scmp.eq.s32.totalorder %s25, 0
      %p156 = por %p154, %p155
      %p157 = scmp.ne.s32.totalorder %s145, %s146
      %p158 = scmp.eq.s32.totalorder %s26, 1
      %p159 = por %p157, %p158
      %p161 = scmp.ne.s32.totalorder %s146, %s160
      %p162 = scmp.eq.s32.totalorder %s26, 0
      %p163 = por %p161, %p162
      %s165 = sadd.s32 %s164, 1
      %p168 = scmp.eq.s32.totalorder %s20, 1
      %p169 = scmp.ne.s32.totalorder %s164, %s166
      %p170 = scmp.eq.s32.totalorder %s20, 0
      %p171 = por %p169, %p170
      %p172 = scmp.ne.s32.totalorder %s164, %s166
      %p173 = scmp.eq.s32.totalorder %s25, 1
      %p174 = por %p172, %p173
      %p175 = scmp.ne.s32.totalorder %s166, %s167
      %p176 = scmp.eq.s32.totalorder %s25, 0
      %p177 = por %p175, %p176
      %p178 = scmp.ne.s32.totalorder %s166, %s167
      %p179 = scmp.eq.s32.totalorder %s26, 1
      %p180 = por %p178, %p179
      %p182 = scmp.ne.s32.totalorder %s167, %s181
      %p183 = scmp.eq.s32.totalorder %s26, 0
      %p184 = por %p182, %p183
      %s186 = sadd.s32 %s185, 1
      %p189 = scmp.eq.s32.totalorder %s20, 1
      %p190 = scmp.ne.s32.totalorder %s185, %s187
      %p191 = scmp.eq.s32.totalorder %s20, 0
      %p192 = por %p190, %p191
      %p193 = scmp.ne.s32.totalorder %s185, %s187
      %p194 = scmp.eq.s32.totalorder %s25, 1
      %p195 = por %p193, %p194
      %p196 = scmp.ne.s32.totalorder %s187, %s188
      %p197 = scmp.eq.s32.totalorder %s25, 0
      %p198 = por %p196, %p197
      %p199 = scmp.ne.s32.totalorder %s187, %s188
      %p200 = scmp.eq.s32.totalorder %s26, 1
      %p201 = por %p199, %p200
      %p203 = scmp.ne.s32.totalorder %s188, %s202
      %p204 = scmp.eq.s32.totalorder %s26, 0
      %p205 = por %p203, %p204
      %s206 = ssub.s32 %s20, %s27
      %p207 = scmp.eq.s32.totalorder %s206, 0
      %s209 = sadd.s32 %s208, 1
      %s210 = scalar_select %p207, %s208, %s209
      %p213 = pneg %p207
      %p214 = scmp.eq.s32.totalorder %s20, 1
      %p215 = por %p213, %p214
      %p216 = scmp.ne.s32.totalorder %s208, %s211
      %p217 = scmp.eq.s32.totalorder %s20, 0
      %p218 = por %p216, %p217
      %p219 = scmp.ne.s32.totalorder %s208, %s211
      %p220 = scmp.eq.s32.totalorder %s25, 1
      %p221 = por %p219, %p220
      %p222 = scmp.ne.s32.totalorder %s211, %s212
      %p223 = scmp.eq.s32.totalorder %s25, 0
      %p224 = por %p222, %p223
      %p225 = scmp.ne.s32.totalorder %s211, %s212
      %p226 = scmp.eq.s32.totalorder %s26, 1
      %p227 = por %p225, %p226
      %p229 = scmp.ne.s32.totalorder %s212, %s228
      %p230 = scmp.eq.s32.totalorder %s26, 0
      %p231 = por %p229, %p230
      %p232 = scmp.le.s32.totalorder 1, %s20
      %p233 = scmp.lt.s32.totalorder %s20, 3
      %p234 = pnand %p232, %p233
      %p235 = pneg %p234
      // Predicated region
      $region9: #{tpu_custom_call.1} parent=5 // pred_check
        _
      $region10: #{tpu_custom_call.1} parent=5 // pred_check_branch
        %237 = sbr.rel (%p234) target = $region12
      $region11: #{tpu_custom_call.1} parent=5 // pred_region
        %s238 = ssub.s32 %s20, 1
        // Predicated region
        $region13: #{tpu_custom_call.1} parent=11 // pred_check
          %p239 = pneg %p93
        $region14: #{tpu_custom_call.1} parent=11 // pred_check_branch
          %241 = sbr.rel (%p239) target = $region16
        $region15: #{tpu_custom_call.1} parent=11 // pred_region
          _
        $region16: #{tpu_custom_call.1} parent=11 // pred_fallthru
          _
        // Predicated region
        $region17: #{tpu_custom_call.1} parent=11 // pred_check
          %p242 = pneg %p114
        $region18: #{tpu_custom_call.1} parent=11 // pred_check_branch
          %244 = sbr.rel (%p242) target = $region20
        $region19: #{tpu_custom_call.1} parent=11 // pred_region
          _
        $region20: #{tpu_custom_call.1} parent=11 // pred_fallthru
          _
        // Predicated region
        $region21: #{tpu_custom_call.1} parent=11 // pred_check
          %p245 = pneg %p135
        $region22: #{tpu_custom_call.1} parent=11 // pred_check_branch
          %247 = sbr.rel (%p245) target = $region24
        $region23: #{tpu_custom_call.1} parent=11 // pred_region
          _
        $region24: #{tpu_custom_call.1} parent=11 // pred_fallthru
          _
        // Predicated region
        $region25: #{tpu_custom_call.1} parent=11 // pred_check
          %p248 = pneg %p156
        $region26: #{tpu_custom_call.1} parent=11 // pred_check_branch
          %250 = sbr.rel (%p248) target = $region28
        $region27: #{tpu_custom_call.1} parent=11 // pred_region
          _
        $region28: #{tpu_custom_call.1} parent=11 // pred_fallthru
          _
        // Predicated region
        $region29: #{tpu_custom_call.1} parent=11 // pred_check
          %p251 = pneg %p177
        $region30: #{tpu_custom_call.1} parent=11 // pred_check_branch
          %253 = sbr.rel (%p251) target = $region32
        $region31: #{tpu_custom_call.1} parent=11 // pred_region
          _
        $region32: #{tpu_custom_call.1} parent=11 // pred_fallthru
          _
        // Predicated region
        $region33: #{tpu_custom_call.1} parent=11 // pred_check
          %p254 = pneg %p198
        $region34: #{tpu_custom_call.1} parent=11 // pred_check_branch
          %256 = sbr.rel (%p254) target = $region36
        $region35: #{tpu_custom_call.1} parent=11 // pred_region
          _
        $region36: #{tpu_custom_call.1} parent=11 // pred_fallthru
          _
      $region12: #{tpu_custom_call.1} parent=5 // pred_fallthru
        _
      %p257 = scmp.lt.s32.totalorder %s20, 2
      // Predicated region
      $region37: #{tpu_custom_call.1} parent=5 // pred_check
        %p258 = pneg %p257
      $region38: #{tpu_custom_call.1} parent=5 // pred_check_branch
        %260 = sbr.rel (%p258) target = $region40
      $region39: #{tpu_custom_call.1} parent=5 // pred_region
        // Predicated region
        $region41: #{tpu_custom_call.1} parent=39 // pred_check
          %p261 = pneg %p40
        $region42: #{tpu_custom_call.1} parent=39 // pred_check_branch
          %263 = sbr.rel (%p261) target = $region44
        $region43: #{tpu_custom_call.1} parent=39 // pred_region
          %s264 = sand.u32 %s30, 1
          %s265 = scalar_lea.sflag [#allocation3], %s264
          %s266 = sand.u32 %s30, 1
          %s267 = smul.addr %s266, 8
          %s268 = scalar_lea.vmem [#allocation2], %s267
          %s270 = ssub.s32 128, 128
          %271 = vsyncadd %s265, %s270
          %s272 = smul.addr %s20, 128
          %s273 = scalar_lea.hbm %s0, %s272
          %s275 = sshll.u32 %s268, 4
          %s276 = int_to_ptr.vmem [resolvable:$true] %s275
          %278 = dma.hbm_to_vmem [thread:$0]  %s273, 128, %s276, %s265
        $region44: #{tpu_custom_call.1} parent=39 // pred_fallthru
          _
        // Predicated region
        $region45: #{tpu_custom_call.1} parent=39 // pred_check
          %p279 = pneg %p66
        $region46: #{tpu_custom_call.1} parent=39 // pred_check_branch
          %281 = sbr.rel (%p279) target = $region48
        $region47: #{tpu_custom_call.1} parent=39 // pred_region
          %p282 = scmp.lt.s32.totalorder %s20, 1
          %s283 = scalar_select %p282, %s20, 1
          %s284 = scalar_lea.vmem %s1, %s283
        $region48: #{tpu_custom_call.1} parent=39 // pred_fallthru
          _
      $region40: #{tpu_custom_call.1} parent=5 // pred_fallthru
        _
      %p285 = scmp.le.s32.totalorder 1, %s20
      %p286 = scmp.lt.s32.totalorder %s20, 3
      %p287 = pnand %p285, %p286
      %p288 = pneg %p287
      // Predicated region
      $region49: #{tpu_custom_call.1} parent=5 // pred_check
        _
      $region50: #{tpu_custom_call.1} parent=5 // pred_check_branch
        %290 = sbr.rel (%p287) target = $region52
      $region51: #{tpu_custom_call.1} parent=5 // pred_region
        %s291 = ssub.s32 %s20, 1
        %s292 = sand.u32 %s33, 1
        %s293 = scalar_lea.sflag [#allocation3], %s292
        %s294 = sand.u32 %s33, 1
        %s295 = smul.addr %s294, 8
        %s296 = scalar_lea.vmem [#allocation2], %s295
        // Predicated region
        $region53: #{tpu_custom_call.1} parent=51 // pred_check
          %p297 = pneg %p46
        $region54: #{tpu_custom_call.1} parent=51 // pred_check_branch
          %299 = sbr.rel (%p297) target = $region56
        $region55: #{tpu_custom_call.1} parent=51 // pred_region
          %300 = dma.done %s293, 128
        $region56: #{tpu_custom_call.1} parent=51 // pred_fallthru
          _
        %s301 = sand.u32 %s33, 1
        %s302 = scalar_lea.sflag [#allocation3], %s301
        %s303 = sand.u32 %s33, 1
        %s304 = smul.addr %s303, 8
        %s305 = scalar_lea.vmem [#allocation2], %s304
        %p306 = pneg %p46
        %p307 = pneg %p43
        %p308 = scmp.lt.s32.totalorder %s25, 1
        %s309 = scalar_select %p308, %s25, 1
        %s310 = scalar_lea.vmem %s1, %s309
        %p311 = pneg %p72
        %p312 = pneg %p69
        %p313 = pneg %p93
        %p314 = pneg %p90
        %p315 = pneg %p114
        %p316 = pneg %p111
        %p317 = pneg %p135
        %p318 = pneg %p132
        %p319 = pneg %p156
        %p320 = pneg %p153
        %p321 = pneg %p177
        %p322 = pneg %p174
        %p323 = pneg %p198
        %p324 = pneg %p195
        %p325 = pneg %p224
        %p326 = pneg %p221
        %s327 = sand.u32 %s211, 1
        %s328 = scalar_lea.sflag [#allocation4], %s327
        %s329 = sand.u32 %s211, 1
        %s330 = smul.addr %s329, 8
        %s331 = scalar_lea.vmem [#allocation5], %s330
        %p332 = scmp.lt.s32.totalorder %s25, 1
        %s333 = scalar_select %p332, %s25, 1
        %s334 = scalar_lea.vmem %s1, %s333
        %v336 = vld [vmem:[%s296] sm:$0xff]
        %v337 = vld [vmem:[%s334] sm:$0x1]
        %v338 = vld [vmem:[%s7] sm:$0xf]
        %vm339 = vcmask 261120
        %v340 = vsel %vm339, %v336, 0.0
        %341 = vadd.xlane.f32.xlu0 %v340
        %v342 = vpop.xlane.xlu0 %341
        %v343 = vrcp.pop 32.0
        %v344 = vmul.f32 %v342, %v343
        %v345 = vsub.f32 %v336, %v344
        %v346 = vmul.f32 %v345, %v345
        %v347 = vsel %vm339, %v346, 0.0
        %348 = vadd.xlane.f32.xlu0 %v347
        %v349 = vpop.xlane.xlu0 %348
        %v350 = vmul.f32 %v349, %v343
        %v351 = vadd.f32 %v350, 1e-05
        %v352 = vrsqrt.pop %v351
        %v353 = vmul.f32 %v345, %v352
        %v354 = vlaneseq
        %v355 = vshrl.u32 %v354, 7
        %v356 = vsub.s32 3, %v355
        %v357 = vrot.slane %v338, %v356
        %v358 = vmul.f32 %v353, %v357
        %360 = vrot.lane.b32.xlu0 %v357, 96
        %v361 = vpop.permute.xlu0 %360
        %v363 = vadd.f32 %v358, %v361
        %v364 = vpack.c.bf16 %v363, %v363
        %v365 = vld [vmem:[%s2] sm:$0xf]
        %v366 = vld [vmem:[%s2 + $0x4] sm:$0xf]
        %v367 = vld [vmem:[%s2 + $0x8] sm:$0xf]
        %v368 = vld [vmem:[%s2 + $0xc] sm:$0xf]
        %v369 = vld [vmem:[%s2 + $0x10] sm:$0xf]
        %v370 = vld [vmem:[%s2 + $0x14] sm:$0xf]
        %v371 = vld [vmem:[%s2 + $0x18] sm:$0xf]
        %v372 = vld [vmem:[%s2 + $0x1c] sm:$0xf]
        %v373 = vld [vmem:[%s2 + $0x20] sm:$0xf]
        %v374 = vld [vmem:[%s2 + $0x24] sm:$0xf]
        %v375 = vld [vmem:[%s2 + $0x28] sm:$0xf]
        %v376 = vld [vmem:[%s2 + $0x2c] sm:$0xf]
        %v377 = vld [vmem:[%s2 + $0x30] sm:$0xf]
        %v378 = vld [vmem:[%s2 + $0x34] sm:$0xf]
        %v379 = vld [vmem:[%s2 + $0x38] sm:$0xf]
        %v380 = vld [vmem:[%s2 + $0x3c] sm:$0xf]
        %v381 = vld [vmem:[%s3] sm:$0x1]
        %v382 = vld [vmem:[%s3 + $0x1] sm:$0x1]
        %v383 = vld [vmem:[%s3 + $0x2] sm:$0x1]
        %v384 = vld [vmem:[%s3 + $0x3] sm:$0x1]
        %v389 = vlaneseq
        %v390 = vshrl.u32 %v389, 7
        %v391 = vsub.s32 0, %v390
        %v392 = vrot.slane %v381, %v391
        %v393 = vlaneseq
        %v394 = vshrl.u32 %v393, 7
        %v395 = vsub.s32 0, %v394
        %v396 = vrot.slane %v382, %v395
        %v397 = vlaneseq
        %v398 = vshrl.u32 %v397, 7
        %v399 = vsub.s32 0, %v398
        %v400 = vrot.slane %v383, %v399
        %v401 = vlaneseq
        %v402 = vshrl.u32 %v401, 7
        %v403 = vsub.s32 0, %v402
        %v404 = vrot.slane %v384, %v403
        %v413 = vunpack.c.l.b16 %v365
        %v414 = vunpack.c.l.b16 %v366
        %v415 = vunpack.c.l.b16 %v367
        %v416 = vunpack.c.l.b16 %v368
        %v417 = vpack.c.b16 %v414, %v413
        %v418 = vpack.c.b16 %v416, %v415
        %v422 = vsel %vm339, %v364, 0
        %424 = vmatprep.subr.bf16.mxu0 0
        %425 = vmatpush1.bf16.msra.mxu0 %v417
        %426 = vmatprep.subr.bf16.mxu0 0
        %427 = vmatpush1.bf16.msra.mxu0 %v418
        %428 = vmatprep.subr.bf16.mxu0 0
        %429 = vmatpush1.bf16.msra.mxu0 0
        %430 = vmatprep.subr.bf16.mxu0 0
        %431 = vmatpush1.bf16.msra.mxu0 0
        %432 = vmatprep.subr.bf16.mxu0 0
        %433 = vmatpush1.bf16.msra.mxu0 0
        %434 = vmatprep.subr.bf16.mxu0 0
        %435 = vmatpush1.bf16.msra.mxu0 0
        %436 = vmatprep.subr.bf16.mxu0 0
        %437 = vmatpush1.bf16.msra.mxu0 0
        %438 = vmatprep.subr.bf16.mxu0 0
        %439 = vmatpush1.bf16.msra.mxu0 0
        %440 = vmatprep.subr.bf16.mxu0 0
        %441 = vmatpush1.bf16.msra.mxu0 0
        %442 = vmatprep.subr.bf16.mxu0 0
        %443 = vmatpush1.bf16.msra.mxu0 0
        %444 = vmatprep.subr.bf16.mxu0 0
        %445 = vmatpush1.bf16.msra.mxu0 0
        %446 = vmatprep.subr.bf16.mxu0 0
        %447 = vmatpush1.bf16.msra.mxu0 0
        %448 = vmatprep.subr.bf16.mxu0 0
        %449 = vmatpush1.bf16.msra.mxu0 0
        %450 = vmatprep.subr.bf16.mxu0 0
        %451 = vmatpush1.bf16.msra.mxu0 0
        %452 = vmatprep.subr.bf16.mxu0 0
        %453 = vmatpush1.bf16.msra.mxu0 0
        %454 = vmatprep.subr.bf16.mxu0 0
        %455 = vmatpush1.bf16.msra.mxu0 0
        %456 = vmatprep.mubr.bf16.mxu0 0
        %457 = vmatmul.mubr.bf16.gmra.mrb[0].mxu0 %v422
        %v458 = vpop.f32.mrb[0].mxu0
        %v459 = vadd.f32 %v392, %v458
        %v460 = vpop.f32.mrb[0].mxu0
        %v461 = vpop.f32.mrb[0].mxu0
        %v462 = vpop.f32.mrb[0].mxu0
        %463 = vdwg.mxu0
        %v468 = vunpack.c.l.b16 %v369
        %v469 = vunpack.c.l.b16 %v370
        %v470 = vunpack.c.l.b16 %v371
        %v471 = vunpack.c.l.b16 %v372
        %v472 = vpack.c.b16 %v469, %v468
        %v473 = vpack.c.b16 %v471, %v470
        %476 = vmatprep.subr.bf16.mxu0 0
        %477 = vmatpush1.bf16.msra.mxu0 %v472
        %478 = vmatprep.subr.bf16.mxu0 0
        %479 = vmatpush1.bf16.msra.mxu0 %v473
        %480 = vmatprep.subr.bf16.mxu0 0
        %481 = vmatpush1.bf16.msra.mxu0 0
        %482 = vmatprep.subr.bf16.mxu0 0
        %483 = vmatpush1.bf16.msra.mxu0 0
        %484 = vmatprep.subr.bf16.mxu0 0
        %485 = vmatpush1.bf16.msra.mxu0 0
        %486 = vmatprep.subr.bf16.mxu0 0
        %487 = vmatpush1.bf16.msra.mxu0 0
        %488 = vmatprep.subr.bf16.mxu0 0
        %489 = vmatpush1.bf16.msra.mxu0 0
        %490 = vmatprep.subr.bf16.mxu0 0
        %491 = vmatpush1.bf16.msra.mxu0 0
        %492 = vmatprep.subr.bf16.mxu0 0
        %493 = vmatpush1.bf16.msra.mxu0 0
        %494 = vmatprep.subr.bf16.mxu0 0
        %495 = vmatpush1.bf16.msra.mxu0 0
        %496 = vmatprep.subr.bf16.mxu0 0
        %497 = vmatpush1.bf16.msra.mxu0 0
        %498 = vmatprep.subr.bf16.mxu0 0
        %499 = vmatpush1.bf16.msra.mxu0 0
        %500 = vmatprep.subr.bf16.mxu0 0
        %501 = vmatpush1.bf16.msra.mxu0 0
        %502 = vmatprep.subr.bf16.mxu0 0
        %503 = vmatpush1.bf16.msra.mxu0 0
        %504 = vmatprep.subr.bf16.mxu0 0
        %505 = vmatpush1.bf16.msra.mxu0 0
        %506 = vmatprep.subr.bf16.mxu0 0
        %507 = vmatpush1.bf16.msra.mxu0 0
        %508 = vmatprep.mubr.bf16.mxu0 0
        %509 = vmatmul.mubr.bf16.gmra.mrb[0].mxu0 %v422
        %v510 = vpop.f32.mrb[0].mxu0
        %v511 = vadd.f32 %v396, %v510
        %v512 = vpop.f32.mrb[0].mxu0
        %v513 = vpop.f32.mrb[0].mxu0
        %v514 = vpop.f32.mrb[0].mxu0
        %515 = vdwg.mxu0
        %v520 = vunpack.c.l.b16 %v373
        %v521 = vunpack.c.l.b16 %v374
        %v522 = vunpack.c.l.b16 %v375
        %v523 = vunpack.c.l.b16 %v376
        %v524 = vpack.c.b16 %v521, %v520
        %v525 = vpack.c.b16 %v523, %v522
        %528 = vmatprep.subr.bf16.mxu0 0
        %529 = vmatpush1.bf16.msra.mxu0 %v524
        %530 = vmatprep.subr.bf16.mxu0 0
        %531 = vmatpush1.bf16.msra.mxu0 %v525
        %532 = vmatprep.subr.bf16.mxu0 0
        %533 = vmatpush1.bf16.msra.mxu0 0
        %534 = vmatprep.subr.bf16.mxu0 0
        %535 = vmatpush1.bf16.msra.mxu0 0
        %536 = vmatprep.subr.bf16.mxu0 0
        %537 = vmatpush1.bf16.msra.mxu0 0
        %538 = vmatprep.subr.bf16.mxu0 0
        %539 = vmatpush1.bf16.msra.mxu0 0
        %540 = vmatprep.subr.bf16.mxu0 0
        %541 = vmatpush1.bf16.msra.mxu0 0
        %542 = vmatprep.subr.bf16.mxu0 0
        %543 = vmatpush1.bf16.msra.mxu0 0
        %544 = vmatprep.subr.bf16.mxu0 0
        %545 = vmatpush1.bf16.msra.mxu0 0
        %546 = vmatprep.subr.bf16.mxu0 0
        %547 = vmatpush1.bf16.msra.mxu0 0
        %548 = vmatprep.subr.bf16.mxu0 0
        %549 = vmatpush1.bf16.msra.mxu0 0
        %550 = vmatprep.subr.bf16.mxu0 0
        %551 = vmatpush1.bf16.msra.mxu0 0
        %552 = vmatprep.subr.bf16.mxu0 0
        %553 = vmatpush1.bf16.msra.mxu0 0
        %554 = vmatprep.subr.bf16.mxu0 0
        %555 = vmatpush1.bf16.msra.mxu0 0
        %556 = vmatprep.subr.bf16.mxu0 0
        %557 = vmatpush1.bf16.msra.mxu0 0
        %558 = vmatprep.subr.bf16.mxu0 0
        %559 = vmatpush1.bf16.msra.mxu0 0
        %560 = vmatprep.mubr.bf16.mxu0 0
        %561 = vmatmul.mubr.bf16.gmra.mrb[0].mxu0 %v422
        %v562 = vpop.f32.mrb[0].mxu0
        %v563 = vadd.f32 %v400, %v562
        %v564 = vpop.f32.mrb[0].mxu0
        %v565 = vpop.f32.mrb[0].mxu0
        %v566 = vpop.f32.mrb[0].mxu0
        %567 = vdwg.mxu0
        %v572 = vunpack.c.l.b16 %v377
        %v573 = vunpack.c.l.b16 %v378
        %v574 = vunpack.c.l.b16 %v379
        %v575 = vunpack.c.l.b16 %v380
        %v576 = vpack.c.b16 %v573, %v572
        %v577 = vpack.c.b16 %v575, %v574
        %580 = vmatprep.subr.bf16.mxu0 0
        %581 = vmatpush1.bf16.msra.mxu0 %v576
        %582 = vmatprep.subr.bf16.mxu0 0
        %583 = vmatpush1.bf16.msra.mxu0 %v577
        %584 = vmatprep.subr.bf16.mxu0 0
        %585 = vmatpush1.bf16.msra.mxu0 0
        %586 = vmatprep.subr.bf16.mxu0 0
        %587 = vmatpush1.bf16.msra.mxu0 0
        %588 = vmatprep.subr.bf16.mxu0 0
        %589 = vmatpush1.bf16.msra.mxu0 0
        %590 = vmatprep.subr.bf16.mxu0 0
        %591 = vmatpush1.bf16.msra.mxu0 0
        %592 = vmatprep.subr.bf16.mxu0 0
        %593 = vmatpush1.bf16.msra.mxu0 0
        %594 = vmatprep.subr.bf16.mxu0 0
        %595 = vmatpush1.bf16.msra.mxu0 0
        %596 = vmatprep.subr.bf16.mxu0 0
        %597 = vmatpush1.bf16.msra.mxu0 0
        %598 = vmatprep.subr.bf16.mxu0 0
        %599 = vmatpush1.bf16.msra.mxu0 0
        %600 = vmatprep.subr.bf16.mxu0 0
        %601 = vmatpush1.bf16.msra.mxu0 0
        %602 = vmatprep.subr.bf16.mxu0 0
        %603 = vmatpush1.bf16.msra.mxu0 0
        %604 = vmatprep.subr.bf16.mxu0 0
        %605 = vmatpush1.bf16.msra.mxu0 0
        %606 = vmatprep.subr.bf16.mxu0 0
        %607 = vmatpush1.bf16.msra.mxu0 0
        %608 = vmatprep.subr.bf16.mxu0 0
        %609 = vmatpush1.bf16.msra.mxu0 0
        %610 = vmatprep.subr.bf16.mxu0 0
        %611 = vmatpush1.bf16.msra.mxu0 0
        %612 = vmatprep.mubr.bf16.mxu0 0
        %613 = vmatmul.mubr.bf16.gmra.mrb[0].mxu0 %v422
        %v614 = vpop.f32.mrb[0].mxu0
        %v615 = vadd.f32 %v404, %v614
        %v616 = vpop.f32.mrb[0].mxu0
        %v617 = vpop.f32.mrb[0].mxu0
        %v618 = vpop.f32.mrb[0].mxu0
        %619 = vdwg.mxu0
        %v620 = vpack.c.bf16 %v459, %v459
        %v621 = vpack.c.bf16 %v511, %v511
        %v622 = vpack.c.bf16 %v563, %v563
        %v623 = vpack.c.bf16 %v615, %v615
        %v625 = vlaneseq
        %v626 = vshrl.u32 %v625, 7
        %v627 = vsub.s32 0, %v626
        %v628 = vrot.slane %v337, %v627
        %631 = vrot.lane.b32.xlu0 %v620, 120
        %v632 = vpop.permute.xlu0 %631
        %vm633 = vcmask 64512
        %v635 = vsel %vm633, %v620, 0
        %v638 = vsel %vm633, %v632, 0
        %640 = vmatprep.subr.bf16.mxu0 0
        %641 = vmatpush1.bf16.xpose.msra.mxu0 %v638
        %642 = vmatprep.subr.bf16.mxu0 0
        %643 = vmatpush1.bf16.xpose.msra.mxu0 0
        %644 = vmatprep.subr.bf16.mxu0 0
        %645 = vmatpush1.bf16.xpose.msra.mxu0 0
        %646 = vmatprep.subr.bf16.mxu0 0
        %647 = vmatpush1.bf16.xpose.msra.mxu0 0
        %648 = vmatprep.subr.bf16.mxu0 0
        %649 = vmatpush1.bf16.xpose.msra.mxu0 0
        %650 = vmatprep.subr.bf16.mxu0 0
        %651 = vmatpush1.bf16.xpose.msra.mxu0 0
        %652 = vmatprep.subr.bf16.mxu0 0
        %653 = vmatpush1.bf16.xpose.msra.mxu0 0
        %654 = vmatprep.subr.bf16.mxu0 0
        %655 = vmatpush1.bf16.xpose.msra.mxu0 0
        %656 = vmatprep.subr.bf16.mxu0 0
        %657 = vmatpush1.bf16.xpose.msra.mxu0 0
        %658 = vmatprep.subr.bf16.mxu0 0
        %659 = vmatpush1.bf16.xpose.msra.mxu0 0
        %660 = vmatprep.subr.bf16.mxu0 0
        %661 = vmatpush1.bf16.xpose.msra.mxu0 0
        %662 = vmatprep.subr.bf16.mxu0 0
        %663 = vmatpush1.bf16.xpose.msra.mxu0 0
        %664 = vmatprep.subr.bf16.mxu0 0
        %665 = vmatpush1.bf16.xpose.msra.mxu0 0
        %666 = vmatprep.subr.bf16.mxu0 0
        %667 = vmatpush1.bf16.xpose.msra.mxu0 0
        %668 = vmatprep.subr.bf16.mxu0 0
        %669 = vmatpush1.bf16.xpose.msra.mxu0 0
        %670 = vmatprep.subr.bf16.mxu0 0
        %671 = vmatpush1.bf16.xpose.msra.mxu0 0
        %672 = vmatprep.mubr.bf16.mxu0 0
        %673 = vmatmul.mubr.bf16.gmra.mrb[0].mxu0 %v635
        %v674 = vpop.f32.mrb[0].mxu0
        %v675 = vadd.f32 %v628, %v674
        %v676 = vpop.f32.mrb[0].mxu0
        %v677 = vpop.f32.mrb[0].mxu0
        %v678 = vpop.f32.mrb[0].mxu0
        %679 = vdwg.mxu0
        %681 = vrot.lane.b32.xlu0 %v621, 120
        %v682 = vpop.permute.xlu0 %681
        %v684 = vsel %vm633, %v621, 0
        %v687 = vsel %vm633, %v682, 0
        %689 = vmatprep.subr.bf16.mxu0 0
        %690 = vmatpush1.bf16.xpose.msra.mxu0 %v687
        %691 = vmatprep.subr.bf16.mxu0 0
        %692 = vmatpush1.bf16.xpose.msra.mxu0 0
        %693 = vmatprep.subr.bf16.mxu0 0
        %694 = vmatpush1.bf16.xpose.msra.mxu0 0
        %695 = vmatprep.subr.bf16.mxu0 0
        %696 = vmatpush1.bf16.xpose.msra.mxu0 0
        %697 = vmatprep.subr.bf16.mxu0 0
        %698 = vmatpush1.bf16.xpose.msra.mxu0 0
        %699 = vmatprep.subr.bf16.mxu0 0
        %700 = vmatpush1.bf16.xpose.msra.mxu0 0
        %701 = vmatprep.subr.bf16.mxu0 0
        %702 = vmatpush1.bf16.xpose.msra.mxu0 0
        %703 = vmatprep.subr.bf16.mxu0 0
        %704 = vmatpush1.bf16.xpose.msra.mxu0 0
        %705 = vmatprep.subr.bf16.mxu0 0
        %706 = vmatpush1.bf16.xpose.msra.mxu0 0
        %707 = vmatprep.subr.bf16.mxu0 0
        %708 = vmatpush1.bf16.xpose.msra.mxu0 0
        %709 = vmatprep.subr.bf16.mxu0 0
        %710 = vmatpush1.bf16.xpose.msra.mxu0 0
        %711 = vmatprep.subr.bf16.mxu0 0
        %712 = vmatpush1.bf16.xpose.msra.mxu0 0
        %713 = vmatprep.subr.bf16.mxu0 0
        %714 = vmatpush1.bf16.xpose.msra.mxu0 0
        %715 = vmatprep.subr.bf16.mxu0 0
        %716 = vmatpush1.bf16.xpose.msra.mxu0 0
        %717 = vmatprep.subr.bf16.mxu0 0
        %718 = vmatpush1.bf16.xpose.msra.mxu0 0
        %719 = vmatprep.subr.bf16.mxu0 0
        %720 = vmatpush1.bf16.xpose.msra.mxu0 0
        %721 = vmatprep.mubr.bf16.mxu0 0
        %722 = vmatmul.mubr.bf16.gmra.mrb[0].mxu0 %v684
        %v723 = vpop.f32.mrb[0].mxu0
        %v724 = vadd.f32 %v628, %v723
        %v725 = vpop.f32.mrb[0].mxu0
        %v726 = vpop.f32.mrb[0].mxu0
        %v727 = vpop.f32.mrb[0].mxu0
        %728 = vdwg.mxu0
        %730 = vrot.lane.b32.xlu0 %v622, 120
        %v731 = vpop.permute.xlu0 %730
        %v733 = vsel %vm633, %v622, 0
        %v736 = vsel %vm633, %v731, 0
        %738 = vmatprep.subr.bf16.mxu0 0
        %739 = vmatpush1.bf16.xpose.msra.mxu0 %v736
        %740 = vmatprep.subr.bf16.mxu0 0
        %741 = vmatpush1.bf16.xpose.msra.mxu0 0
        %742 = vmatprep.subr.bf16.mxu0 0
        %743 = vmatpush1.bf16.xpose.msra.mxu0 0
        %744 = vmatprep.subr.bf16.mxu0 0
        %745 = vmatpush1.bf16.xpose.msra.mxu0 0
        %746 = vmatprep.subr.bf16.mxu0 0
        %747 = vmatpush1.bf16.xpose.msra.mxu0 0
        %748 = vmatprep.subr.bf16.mxu0 0
        %749 = vmatpush1.bf16.xpose.msra.mxu0 0
        %750 = vmatprep.subr.bf16.mxu0 0
        %751 = vmatpush1.bf16.xpose.msra.mxu0 0
        %752 = vmatprep.subr.bf16.mxu0 0
        %753 = vmatpush1.bf16.xpose.msra.mxu0 0
        %754 = vmatprep.subr.bf16.mxu0 0
        %755 = vmatpush1.bf16.xpose.msra.mxu0 0
        %756 = vmatprep.subr.bf16.mxu0 0
        %757 = vmatpush1.bf16.xpose.msra.mxu0 0
        %758 = vmatprep.subr.bf16.mxu0 0
        %759 = vmatpush1.bf16.xpose.msra.mxu0 0
        %760 = vmatprep.subr.bf16.mxu0 0
        %761 = vmatpush1.bf16.xpose.msra.mxu0 0
        %762 = vmatprep.subr.bf16.mxu0 0
        %763 = vmatpush1.bf16.xpose.msra.mxu0 0
        %764 = vmatprep.subr.bf16.mxu0 0
        %765 = vmatpush1.bf16.xpose.msra.mxu0 0
        %766 = vmatprep.subr.bf16.mxu0 0
        %767 = vmatpush1.bf16.xpose.msra.mxu0 0
        %768 = vmatprep.subr.bf16.mxu0 0
        %769 = vmatpush1.bf16.xpose.msra.mxu0 0
        %770 = vmatprep.mubr.bf16.mxu0 0
        %771 = vmatmul.mubr.bf16.gmra.mrb[0].mxu0 %v733
        %v772 = vpop.f32.mrb[0].mxu0
        %v773 = vadd.f32 %v628, %v772
        %v774 = vpop.f32.mrb[0].mxu0
        %v775 = vpop.f32.mrb[0].mxu0
        %v776 = vpop.f32.mrb[0].mxu0
        %777 = vdwg.mxu0
        %779 = vrot.lane.b32.xlu0 %v623, 120
        %v780 = vpop.permute.xlu0 %779
        %v782 = vsel %vm633, %v623, 0
        %v785 = vsel %vm633, %v780, 0
        %787 = vmatprep.subr.bf16.mxu0 0
        %788 = vmatpush1.bf16.xpose.msra.mxu0 %v785
        %789 = vmatprep.subr.bf16.mxu0 0
        %790 = vmatpush1.bf16.xpose.msra.mxu0 0
        %791 = vmatprep.subr.bf16.mxu0 0
        %792 = vmatpush1.bf16.xpose.msra.mxu0 0
        %793 = vmatprep.subr.bf16.mxu0 0
        %794 = vmatpush1.bf16.xpose.msra.mxu0 0
        %795 = vmatprep.subr.bf16.mxu0 0
        %796 = vmatpush1.bf16.xpose.msra.mxu0 0
        %797 = vmatprep.subr.bf16.mxu0 0
        %798 = vmatpush1.bf16.xpose.msra.mxu0 0
        %799 = vmatprep.subr.bf16.mxu0 0
        %800 = vmatpush1.bf16.xpose.msra.mxu0 0
        %801 = vmatprep.subr.bf16.mxu0 0
        %802 = vmatpush1.bf16.xpose.msra.mxu0 0
        %803 = vmatprep.subr.bf16.mxu0 0
        %804 = vmatpush1.bf16.xpose.msra.mxu0 0
        %805 = vmatprep.subr.bf16.mxu0 0
        %806 = vmatpush1.bf16.xpose.msra.mxu0 0
        %807 = vmatprep.subr.bf16.mxu0 0
        %808 = vmatpush1.bf16.xpose.msra.mxu0 0
        %809 = vmatprep.subr.bf16.mxu0 0
        %810 = vmatpush1.bf16.xpose.msra.mxu0 0
        %811 = vmatprep.subr.bf16.mxu0 0
        %812 = vmatpush1.bf16.xpose.msra.mxu0 0
        %813 = vmatprep.subr.bf16.mxu0 0
        %814 = vmatpush1.bf16.xpose.msra.mxu0 0
        %815 = vmatprep.subr.bf16.mxu0 0
        %816 = vmatpush1.bf16.xpose.msra.mxu0 0
        %817 = vmatprep.subr.bf16.mxu0 0
        %818 = vmatpush1.bf16.xpose.msra.mxu0 0
        %819 = vmatprep.mubr.bf16.mxu0 0
        %820 = vmatmul.mubr.bf16.gmra.mrb[0].mxu0 %v782
        %v821 = vpop.f32.mrb[0].mxu0
        %v822 = vadd.f32 %v628, %v821
        %v823 = vpop.f32.mrb[0].mxu0
        %v824 = vpop.f32.mrb[0].mxu0
        %v825 = vpop.f32.mrb[0].mxu0
        %826 = vdwg.mxu0
        %v827 = vlaneseq
        %v828 = vshrl.u32 %v827, 7
        %v829 = vlaneseq
        %v830 = vand.u32 %v829, 127
        %vm831 = vcmp.ge.s32.totalorder %v828, %v830
        %v832 = vsel %vm831, 1, 0
        %vm833 = vcmp.eq.s32.totalorder %v832, 1
        %v834 = vsel %vm833, %v675, -3.4028235e+38
        %v835 = vsel %vm833, %v724, -3.4028235e+38
        %v836 = vsel %vm833, %v773, -3.4028235e+38
        %v837 = vsel %vm833, %v822, -3.4028235e+38
        %v838 = vsel %vm633, %v834, -inf
        %839 = vmax.xlane.f32.xlu0 %v838
        %v840 = vpop.xlane.xlu0 %839
        %v841 = vsel %vm633, %v835, -inf
        %842 = vmax.xlane.f32.xlu0 %v841
        %v843 = vpop.xlane.xlu0 %842
        %v844 = vsel %vm633, %v836, -inf
        %845 = vmax.xlane.f32.xlu0 %v844
        %v846 = vpop.xlane.xlu0 %845
        %v847 = vsel %vm633, %v837, -inf
        %848 = vmax.xlane.f32.xlu0 %v847
        %v849 = vpop.xlane.xlu0 %848
        %v850 = vsub.f32 %v834, %v840
        %v851 = vsub.f32 %v835, %v843
        %v852 = vsub.f32 %v836, %v846
        %v853 = vsub.f32 %v837, %v849
        %v854 = vmul.f32 %v850, 1.442695
        %v855 = vpow.pop %v854
        %v856 = vmul.f32 %v851, 1.442695
        %v857 = vpow.pop %v856
        %v858 = vmul.f32 %v852, 1.442695
        %v859 = vpow.pop %v858
        %v860 = vmul.f32 %v853, 1.442695
        %v861 = vpow.pop %v860
        %v862 = vsel %vm633, %v855, 0.0
        %863 = vadd.xlane.f32.xlu0 %v862
        %v864 = vpop.xlane.xlu0 %863
        %v865 = vsel %vm633, %v857, 0.0
        %866 = vadd.xlane.f32.xlu0 %v865
        %v867 = vpop.xlane.xlu0 %866
        %v868 = vsel %vm633, %v859, 0.0
        %869 = vadd.xlane.f32.xlu0 %v868
        %v870 = vpop.xlane.xlu0 %869
        %v871 = vsel %vm633, %v861, 0.0
        %872 = vadd.xlane.f32.xlu0 %v871
        %v873 = vpop.xlane.xlu0 %872
        %v874 = vrcp.pop %v864
        %v875 = vrcp.pop %v867
        %v876 = vrcp.pop %v870
        %v877 = vrcp.pop %v873
        %v878 = vmul.f32 %v855, %v874
        %v879 = vmul.f32 %v857, %v875
        %v880 = vmul.f32 %v859, %v876
        %v881 = vmul.f32 %v861, %v877
        %v882 = vpack.c.bf16 %v878, %v878
        %v883 = vpack.c.bf16 %v879, %v879
        %v884 = vpack.c.bf16 %v880, %v880
        %v885 = vpack.c.bf16 %v881, %v881
        %886 = vrot.lane.b32.xlu0 %v620, 112
        %v887 = vpop.permute.xlu0 %886
        %v889 = vsel %vm633, %v882, 0
        %vm891 = vcmask 1043456
        %v893 = vsel %vm891, %v887, 0
        %895 = vmatprep.subr.bf16.mxu0 0
        %896 = vmatpush1.bf16.msra.mxu0 %v893
        %897 = vmatprep.subr.bf16.mxu0 0
        %898 = vmatpush1.bf16.msra.mxu0 0
        %899 = vmatprep.subr.bf16.mxu0 0
        %900 = vmatpush1.bf16.msra.mxu0 0
        %901 = vmatprep.subr.bf16.mxu0 0
        %902 = vmatpush1.bf16.msra.mxu0 0
        %903 = vmatprep.subr.bf16.mxu0 0
        %904 = vmatpush1.bf16.msra.mxu0 0
        %905 = vmatprep.subr.bf16.mxu0 0
        %906 = vmatpush1.bf16.msra.mxu0 0
        %907 = vmatprep.subr.bf16.mxu0 0
        %908 = vmatpush1.bf16.msra.mxu0 0
        %909 = vmatprep.subr.bf16.mxu0 0
        %910 = vmatpush1.bf16.msra.mxu0 0
        %911 = vmatprep.subr.bf16.mxu0 0
        %912 = vmatpush1.bf16.msra.mxu0 0
        %913 = vmatprep.subr.bf16.mxu0 0
        %914 = vmatpush1.bf16.msra.mxu0 0
        %915 = vmatprep.subr.bf16.mxu0 0
        %916 = vmatpush1.bf16.msra.mxu0 0
        %917 = vmatprep.subr.bf16.mxu0 0
        %918 = vmatpush1.bf16.msra.mxu0 0
        %919 = vmatprep.subr.bf16.mxu0 0
        %920 = vmatpush1.bf16.msra.mxu0 0
        %921 = vmatprep.subr.bf16.mxu0 0
        %922 = vmatpush1.bf16.msra.mxu0 0
        %923 = vmatprep.subr.bf16.mxu0 0
        %924 = vmatpush1.bf16.msra.mxu0 0
        %925 = vmatprep.subr.bf16.mxu0 0
        %926 = vmatpush1.bf16.msra.mxu0 0
        %927 = vmatprep.mubr.bf16.mxu0 0
        %928 = vmatmul.mubr.bf16.gmra.mrb[0].mxu0 %v889
        %v929 = vpop.f32.mrb[0].mxu0
        %v930 = vadd.f32 0.0, %v929
        %v931 = vpop.f32.mrb[0].mxu0
        %v932 = vpop.f32.mrb[0].mxu0
        %v933 = vpop.f32.mrb[0].mxu0
        %934 = vdwg.mxu0
        %935 = vrot.lane.b32.xlu0 %v621, 112
        %v936 = vpop.permute.xlu0 %935
        %v938 = vsel %vm633, %v883, 0
        %v941 = vsel %vm891, %v936, 0
        %943 = vmatprep.subr.bf16.mxu0 0
        %944 = vmatpush1.bf16.msra.mxu0 %v941
        %945 = vmatprep.subr.bf16.mxu0 0
        %946 = vmatpush1.bf16.msra.mxu0 0
        %947 = vmatprep.subr.bf16.mxu0 0
        %948 = vmatpush1.bf16.msra.mxu0 0
        %949 = vmatprep.subr.bf16.mxu0 0
        %950 = vmatpush1.bf16.msra.mxu0 0
        %951 = vmatprep.subr.bf16.mxu0 0
        %952 = vmatpush1.bf16.msra.mxu0 0
        %953 = vmatprep.subr.bf16.mxu0 0
        %954 = vmatpush1.bf16.msra.mxu0 0
        %955 = vmatprep.subr.bf16.mxu0 0
        %956 = vmatpush1.bf16.msra.mxu0 0
        %957 = vmatprep.subr.bf16.mxu0 0
        %958 = vmatpush1.bf16.msra.mxu0 0
        %959 = vmatprep.subr.bf16.mxu0 0
        %960 = vmatpush1.bf16.msra.mxu0 0
        %961 = vmatprep.subr.bf16.mxu0 0
        %962 = vmatpush1.bf16.msra.mxu0 0
        %963 = vmatprep.subr.bf16.mxu0 0
        %964 = vmatpush1.bf16.msra.mxu0 0
        %965 = vmatprep.subr.bf16.mxu0 0
        %966 = vmatpush1.bf16.msra.mxu0 0
        %967 = vmatprep.subr.bf16.mxu0 0
        %968 = vmatpush1.bf16.msra.mxu0 0
        %969 = vmatprep.subr.bf16.mxu0 0
        %970 = vmatpush1.bf16.msra.mxu0 0
        %971 = vmatprep.subr.bf16.mxu0 0
        %972 = vmatpush1.bf16.msra.mxu0 0
        %973 = vmatprep.subr.bf16.mxu0 0
        %974 = vmatpush1.bf16.msra.mxu0 0
        %975 = vmatprep.mubr.bf16.mxu0 0
        %976 = vmatmul.mubr.bf16.gmra.mrb[0].mxu0 %v938
        %v977 = vpop.f32.mrb[0].mxu0
        %v978 = vadd.f32 0.0, %v977
        %v979 = vpop.f32.mrb[0].mxu0
        %v980 = vpop.f32.mrb[0].mxu0
        %v981 = vpop.f32.mrb[0].mxu0
        %982 = vdwg.mxu0
        %983 = vrot.lane.b32.xlu0 %v622, 112
        %v984 = vpop.permute.xlu0 %983
        %v986 = vsel %vm633, %v884, 0
        %v989 = vsel %vm891, %v984, 0
        %991 = vmatprep.subr.bf16.mxu0 0
        %992 = vmatpush1.bf16.msra.mxu0 %v989
        %993 = vmatprep.subr.bf16.mxu0 0
        %994 = vmatpush1.bf16.msra.mxu0 0
        %995 = vmatprep.subr.bf16.mxu0 0
        %996 = vmatpush1.bf16.msra.mxu0 0
        %997 = vmatprep.subr.bf16.mxu0 0
        %998 = vmatpush1.bf16.msra.mxu0 0
        %999 = vmatprep.subr.bf16.mxu0 0
        %1000 = vmatpush1.bf16.msra.mxu0 0
        %1001 = vmatprep.subr.bf16.mxu0 0
        %1002 = vmatpush1.bf16.msra.mxu0 0
        %1003 = vmatprep.subr.bf16.mxu0 0
        %1004 = vmatpush1.bf16.msra.mxu0 0
        %1005 = vmatprep.subr.bf16.mxu0 0
        %1006 = vmatpush1.bf16.msra.mxu0 0
        %1007 = vmatprep.subr.bf16.mxu0 0
        %1008 = vmatpush1.bf16.msra.mxu0 0
        %1009 = vmatprep.subr.bf16.mxu0 0
        %1010 = vmatpush1.bf16.msra.mxu0 0
        %1011 = vmatprep.subr.bf16.mxu0 0
        %1012 = vmatpush1.bf16.msra.mxu0 0
        %1013 = vmatprep.subr.bf16.mxu0 0
        %1014 = vmatpush1.bf16.msra.mxu0 0
        %1015 = vmatprep.subr.bf16.mxu0 0
        %1016 = vmatpush1.bf16.msra.mxu0 0
        %1017 = vmatprep.subr.bf16.mxu0 0
        %1018 = vmatpush1.bf16.msra.mxu0 0
        %1019 = vmatprep.subr.bf16.mxu0 0
        %1020 = vmatpush1.bf16.msra.mxu0 0
        %1021 = vmatprep.subr.bf16.mxu0 0
        %1022 = vmatpush1.bf16.msra.mxu0 0
        %1023 = vmatprep.mubr.bf16.mxu0 0
        %1024 = vmatmul.mubr.bf16.gmra.mrb[0].mxu0 %v986
        %v1025 = vpop.f32.mrb[0].mxu0
        %v1026 = vadd.f32 0.0, %v1025
        %v1027 = vpop.f32.mrb[0].mxu0
        %v1028 = vpop.f32.mrb[0].mxu0
        %v1029 = vpop.f32.mrb[0].mxu0
        %1030 = vdwg.mxu0
        %1031 = vrot.lane.b32.xlu0 %v623, 112
        %v1032 = vpop.permute.xlu0 %1031
        %v1034 = vsel %vm633, %v885, 0
        %v1037 = vsel %vm891, %v1032, 0
        %1039 = vmatprep.subr.bf16.mxu0 0
        %1040 = vmatpush1.bf16.msra.mxu0 %v1037
        %1041 = vmatprep.subr.bf16.mxu0 0
        %1042 = vmatpush1.bf16.msra.mxu0 0
        %1043 = vmatprep.subr.bf16.mxu0 0
        %1044 = vmatpush1.bf16.msra.mxu0 0
        %1045 = vmatprep.subr.bf16.mxu0 0
        %1046 = vmatpush1.bf16.msra.mxu0 0
        %1047 = vmatprep.subr.bf16.mxu0 0
        %1048 = vmatpush1.bf16.msra.mxu0 0
        %1049 = vmatprep.subr.bf16.mxu0 0
        %1050 = vmatpush1.bf16.msra.mxu0 0
        %1051 = vmatprep.subr.bf16.mxu0 0
        %1052 = vmatpush1.bf16.msra.mxu0 0
        %1053 = vmatprep.subr.bf16.mxu0 0
        %1054 = vmatpush1.bf16.msra.mxu0 0
        %1055 = vmatprep.subr.bf16.mxu0 0
        %1056 = vmatpush1.bf16.msra.mxu0 0
        %1057 = vmatprep.subr.bf16.mxu0 0
        %1058 = vmatpush1.bf16.msra.mxu0 0
        %1059 = vmatprep.subr.bf16.mxu0 0
        %1060 = vmatpush1.bf16.msra.mxu0 0
        %1061 = vmatprep.subr.bf16.mxu0 0
        %1062 = vmatpush1.bf16.msra.mxu0 0
        %1063 = vmatprep.subr.bf16.mxu0 0
        %1064 = vmatpush1.bf16.msra.mxu0 0
        %1065 = vmatprep.subr.bf16.mxu0 0
        %1066 = vmatpush1.bf16.msra.mxu0 0
        %1067 = vmatprep.subr.bf16.mxu0 0
        %1068 = vmatpush1.bf16.msra.mxu0 0
        %1069 = vmatprep.subr.bf16.mxu0 0
        %1070 = vmatpush1.bf16.msra.mxu0 0
        %1071 = vmatprep.mubr.bf16.mxu0 0
        %1072 = vmatmul.mubr.bf16.gmra.mrb[0].mxu0 %v1034
        %v1073 = vpop.f32.mrb[0].mxu0
        %v1074 = vadd.f32 0.0, %v1073
        %v1075 = vpop.f32.mrb[0].mxu0
        %v1076 = vpop.f32.mrb[0].mxu0
        %v1077 = vpop.f32.mrb[0].mxu0
        %1078 = vdwg.mxu0
        %v1079 = vpack.c.bf16 %v930, %v930
        %v1080 = vpack.c.bf16 %v978, %v978
        %v1081 = vpack.c.bf16 %v1026, %v1026
        %v1082 = vpack.c.bf16 %v1074, %v1074
        %v1083 = vld [vmem:[%s4] sm:$0xf]
        %v1084 = vld [vmem:[%s4 + $0x4] sm:$0xf]
        %v1085 = vld [vmem:[%s4 + $0x8] sm:$0xf]
        %v1086 = vld [vmem:[%s4 + $0xc] sm:$0xf]
        %v1088 = vsel %vm633, %v1079, 0
        %v1091 = vsel %vm891, %v1083, 0
        %1093 = vmatprep.subr.bf16.mxu0 0
        %1094 = vmatpush1.bf16.msra.mxu0 %v1091
        %1095 = vmatprep.subr.bf16.mxu0 0
        %1096 = vmatpush1.bf16.msra.mxu0 0
        %1097 = vmatprep.subr.bf16.mxu0 0
        %1098 = vmatpush1.bf16.msra.mxu0 0
        %1099 = vmatprep.subr.bf16.mxu0 0
        %1100 = vmatpush1.bf16.msra.mxu0 0
        %1101 = vmatprep.subr.bf16.mxu0 0
        %1102 = vmatpush1.bf16.msra.mxu0 0
        %1103 = vmatprep.subr.bf16.mxu0 0
        %1104 = vmatpush1.bf16.msra.mxu0 0
        %1105 = vmatprep.subr.bf16.mxu0 0
        %1106 = vmatpush1.bf16.msra.mxu0 0
        %1107 = vmatprep.subr.bf16.mxu0 0
        %1108 = vmatpush1.bf16.msra.mxu0 0
        %1109 = vmatprep.subr.bf16.mxu0 0
        %1110 = vmatpush1.bf16.msra.mxu0 0
        %1111 = vmatprep.subr.bf16.mxu0 0
        %1112 = vmatpush1.bf16.msra.mxu0 0
        %1113 = vmatprep.subr.bf16.mxu0 0
        %1114 = vmatpush1.bf16.msra.mxu0 0
        %1115 = vmatprep.subr.bf16.mxu0 0
        %1116 = vmatpush1.bf16.msra.mxu0 0
        %1117 = vmatprep.subr.bf16.mxu0 0
        %1118 = vmatpush1.bf16.msra.mxu0 0
        %1119 = vmatprep.subr.bf16.mxu0 0
        %1120 = vmatpush1.bf16.msra.mxu0 0
        %1121 = vmatprep.subr.bf16.mxu0 0
        %1122 = vmatpush1.bf16.msra.mxu0 0
        %1123 = vmatprep.subr.bf16.mxu0 0
        %1124 = vmatpush1.bf16.msra.mxu0 0
        %1125 = vmatprep.mubr.bf16.mxu0 0
        %1126 = vmatmul.mubr.bf16.gmra.mrb[0].mxu0 %v1088
        %v1127 = vpop.f32.mrb[0].mxu0
        %v1128 = vadd.f32 0.0, %v1127
        %v1129 = vpop.f32.mrb[0].mxu0
        %v1130 = vpop.f32.mrb[0].mxu0
        %v1131 = vpop.f32.mrb[0].mxu0
        %1132 = vdwg.mxu0
        %v1134 = vsel %vm633, %v1080, 0
        %v1137 = vsel %vm891, %v1084, 0
        %1139 = vmatprep.subr.bf16.mxu0 0
        %1140 = vmatpush1.bf16.msra.mxu0 %v1137
        %1141 = vmatprep.subr.bf16.mxu0 0
        %1142 = vmatpush1.bf16.msra.mxu0 0
        %1143 = vmatprep.subr.bf16.mxu0 0
        %1144 = vmatpush1.bf16.msra.mxu0 0
        %1145 = vmatprep.subr.bf16.mxu0 0
        %1146 = vmatpush1.bf16.msra.mxu0 0
        %1147 = vmatprep.subr.bf16.mxu0 0
        %1148 = vmatpush1.bf16.msra.mxu0 0
        %1149 = vmatprep.subr.bf16.mxu0 0
        %1150 = vmatpush1.bf16.msra.mxu0 0
        %1151 = vmatprep.subr.bf16.mxu0 0
        %1152 = vmatpush1.bf16.msra.mxu0 0
        %1153 = vmatprep.subr.bf16.mxu0 0
        %1154 = vmatpush1.bf16.msra.mxu0 0
        %1155 = vmatprep.subr.bf16.mxu0 0
        %1156 = vmatpush1.bf16.msra.mxu0 0
        %1157 = vmatprep.subr.bf16.mxu0 0
        %1158 = vmatpush1.bf16.msra.mxu0 0
        %1159 = vmatprep.subr.bf16.mxu0 0
        %1160 = vmatpush1.bf16.msra.mxu0 0
        %1161 = vmatprep.subr.bf16.mxu0 0
        %1162 = vmatpush1.bf16.msra.mxu0 0
        %1163 = vmatprep.subr.bf16.mxu0 0
        %1164 = vmatpush1.bf16.msra.mxu0 0
        %1165 = vmatprep.subr.bf16.mxu0 0
        %1166 = vmatpush1.bf16.msra.mxu0 0
        %1167 = vmatprep.subr.bf16.mxu0 0
        %1168 = vmatpush1.bf16.msra.mxu0 0
        %1169 = vmatprep.subr.bf16.mxu0 0
        %1170 = vmatpush1.bf16.msra.mxu0 0
        %1171 = vmatprep.mubr.bf16.mxu0 0
        %1172 = vmatmul.mubr.bf16.gmra.mrb[0].mxu0 %v1134
        %v1173 = vpop.f32.mrb[0].mxu0
        %v1174 = vadd.f32 0.0, %v1173
        %v1175 = vpop.f32.mrb[0].mxu0
        %v1176 = vpop.f32.mrb[0].mxu0
        %v1177 = vpop.f32.mrb[0].mxu0
        %1178 = vdwg.mxu0
        %v1180 = vsel %vm633, %v1081, 0
        %v1183 = vsel %vm891, %v1085, 0
        %1185 = vmatprep.subr.bf16.mxu0 0
        %1186 = vmatpush1.bf16.msra.mxu0 %v1183
        %1187 = vmatprep.subr.bf16.mxu0 0
        %1188 = vmatpush1.bf16.msra.mxu0 0
        %1189 = vmatprep.subr.bf16.mxu0 0
        %1190 = vmatpush1.bf16.msra.mxu0 0
        %1191 = vmatprep.subr.bf16.mxu0 0
        %1192 = vmatpush1.bf16.msra.mxu0 0
        %1193 = vmatprep.subr.bf16.mxu0 0
        %1194 = vmatpush1.bf16.msra.mxu0 0
        %1195 = vmatprep.subr.bf16.mxu0 0
        %1196 = vmatpush1.bf16.msra.mxu0 0
        %1197 = vmatprep.subr.bf16.mxu0 0
        %1198 = vmatpush1.bf16.msra.mxu0 0
        %1199 = vmatprep.subr.bf16.mxu0 0
        %1200 = vmatpush1.bf16.msra.mxu0 0
        %1201 = vmatprep.subr.bf16.mxu0 0
        %1202 = vmatpush1.bf16.msra.mxu0 0
        %1203 = vmatprep.subr.bf16.mxu0 0
        %1204 = vmatpush1.bf16.msra.mxu0 0
        %1205 = vmatprep.subr.bf16.mxu0 0
        %1206 = vmatpush1.bf16.msra.mxu0 0
        %1207 = vmatprep.subr.bf16.mxu0 0
        %1208 = vmatpush1.bf16.msra.mxu0 0
        %1209 = vmatprep.subr.bf16.mxu0 0
        %1210 = vmatpush1.bf16.msra.mxu0 0
        %1211 = vmatprep.subr.bf16.mxu0 0
        %1212 = vmatpush1.bf16.msra.mxu0 0
        %1213 = vmatprep.subr.bf16.mxu0 0
        %1214 = vmatpush1.bf16.msra.mxu0 0
        %1215 = vmatprep.subr.bf16.mxu0 0
        %1216 = vmatpush1.bf16.msra.mxu0 0
        %1217 = vmatprep.mubr.bf16.mxu0 0
        %1218 = vmatmul.mubr.bf16.gmra.mrb[0].mxu0 %v1180
        %v1219 = vpop.f32.mrb[0].mxu0
        %v1220 = vadd.f32 0.0, %v1219
        %v1221 = vpop.f32.mrb[0].mxu0
        %v1222 = vpop.f32.mrb[0].mxu0
        %v1223 = vpop.f32.mrb[0].mxu0
        %1224 = vdwg.mxu0
        %v1226 = vsel %vm633, %v1082, 0
        %v1229 = vsel %vm891, %v1086, 0
        %1231 = vmatprep.subr.bf16.mxu0 0
        %1232 = vmatpush1.bf16.msra.mxu0 %v1229
        %1233 = vmatprep.subr.bf16.mxu0 0
        %1234 = vmatpush1.bf16.msra.mxu0 0
        %1235 = vmatprep.subr.bf16.mxu0 0
        %1236 = vmatpush1.bf16.msra.mxu0 0
        %1237 = vmatprep.subr.bf16.mxu0 0
        %1238 = vmatpush1.bf16.msra.mxu0 0
        %1239 = vmatprep.subr.bf16.mxu0 0
        %1240 = vmatpush1.bf16.msra.mxu0 0
        %1241 = vmatprep.subr.bf16.mxu0 0
        %1242 = vmatpush1.bf16.msra.mxu0 0
        %1243 = vmatprep.subr.bf16.mxu0 0
        %1244 = vmatpush1.bf16.msra.mxu0 0
        %1245 = vmatprep.subr.bf16.mxu0 0
        %1246 = vmatpush1.bf16.msra.mxu0 0
        %1247 = vmatprep.subr.bf16.mxu0 0
        %1248 = vmatpush1.bf16.msra.mxu0 0
        %1249 = vmatprep.subr.bf16.mxu0 0
        %1250 = vmatpush1.bf16.msra.mxu0 0
        %1251 = vmatprep.subr.bf16.mxu0 0
        %1252 = vmatpush1.bf16.msra.mxu0 0
        %1253 = vmatprep.subr.bf16.mxu0 0
        %1254 = vmatpush1.bf16.msra.mxu0 0
        %1255 = vmatprep.subr.bf16.mxu0 0
        %1256 = vmatpush1.bf16.msra.mxu0 0
        %1257 = vmatprep.subr.bf16.mxu0 0
        %1258 = vmatpush1.bf16.msra.mxu0 0
        %1259 = vmatprep.subr.bf16.mxu0 0
        %1260 = vmatpush1.bf16.msra.mxu0 0
        %1261 = vmatprep.subr.bf16.mxu0 0
        %1262 = vmatpush1.bf16.msra.mxu0 0
        %1263 = vmatprep.mubr.bf16.mxu0 0
        %1264 = vmatmul.mubr.bf16.gmra.mrb[0].mxu0 %v1226
        %v1265 = vpop.f32.mrb[0].mxu0
        %v1266 = vadd.f32 0.0, %v1265
        %v1267 = vpop.f32.mrb[0].mxu0
        %v1268 = vpop.f32.mrb[0].mxu0
        %v1269 = vpop.f32.mrb[0].mxu0
        %1270 = vdwg.mxu0
        %v1271 = vsel %vm339, %v1128, 0.0
        %v1272 = vsel %vm339, %v1174, 0.0
        %v1273 = vadd.f32 %v1271, %v1272
        %v1274 = vsel %vm339, %v1220, 0.0
        %v1275 = vadd.f32 %v1273, %v1274
        %v1276 = vsel %vm339, %v1266, 0.0
        %v1277 = vadd.f32 %v1275, %v1276
        %v1278 = vadd.f32 %v336, %v1277
        %v1279 = vlaneseq
        %v1280 = vshrl.u32 %v1279, 7
        %v1281 = vsub.s32 0, %v1280
        %v1282 = vrot.slane %v338, %v1281
        %v1283 = vadd.f32 %v1278, %v1282
        %v1284 = vsel %vm339, %v1283, 0.0
        %1285 = vadd.xlane.f32.xlu0 %v1284
        %v1286 = vpop.xlane.xlu0 %1285
        %v1287 = vmul.f32 %v1286, %v343
        %v1288 = vsub.f32 %v1283, %v1287
        %v1289 = vmul.f32 %v1288, %v1288
        %v1290 = vsel %vm339, %v1289, 0.0
        %1291 = vadd.xlane.f32.xlu0 %v1290
        %v1292 = vpop.xlane.xlu0 %1291
        %v1293 = vmul.f32 %v1292, %v343
        %v1294 = vadd.f32 %v1293, 1e-05
        %v1295 = vrsqrt.pop %v1294
        %v1296 = vmul.f32 %v1288, %v1295
        %1297 = vrot.lane.b32.xlu0 %v357, 64
        %v1298 = vpop.permute.xlu0 %1297
        %v1300 = vmul.f32 %v1296, %v1298
        %1301 = vrot.lane.b32.xlu0 %v357, 32
        %v1302 = vpop.permute.xlu0 %1301
        %v1304 = vadd.f32 %v1300, %v1302
        %v1305 = vld [vmem:[%s5] sm:$0xff]
        %v1306 = vld [vmem:[%s5 + $0x8] sm:$0xff]
        %v1307 = vld [vmem:[%s5 + $0x10] sm:$0xff]
        %v1308 = vld [vmem:[%s5 + $0x18] sm:$0xff]
        %v1309 = vld [vmem:[%s6] sm:$0xf]
        %v1310 = vld [vmem:[%s6 + $0x4] sm:$0xf]
        %v1311 = vld [vmem:[%s6 + $0x8] sm:$0xf]
        %v1312 = vld [vmem:[%s6 + $0xc] sm:$0xf]
        %v1313 = vld [vmem:[%s6 + $0x10] sm:$0xf]
        %v1314 = vld [vmem:[%s6 + $0x14] sm:$0xf]
        %v1315 = vld [vmem:[%s6 + $0x18] sm:$0xf]
        %v1316 = vld [vmem:[%s6 + $0x1c] sm:$0xf]
        %v1317 = vld [vmem:[%s6 + $0x20] sm:$0xf]
        %v1318 = vld [vmem:[%s6 + $0x24] sm:$0xf]
        %v1319 = vld [vmem:[%s6 + $0x28] sm:$0xf]
        %v1320 = vld [vmem:[%s6 + $0x2c] sm:$0xf]
        %v1321 = vld [vmem:[%s6 + $0x30] sm:$0xf]
        %v1322 = vld [vmem:[%s6 + $0x34] sm:$0xf]
        %v1323 = vld [vmem:[%s6 + $0x38] sm:$0xf]
        %v1324 = vld [vmem:[%s6 + $0x3c] sm:$0xf]
        %v1325 = vld [vmem:[%s6 + $0x40] sm:$0xf]
        %v1326 = vld [vmem:[%s6 + $0x44] sm:$0xf]
        %v1327 = vld [vmem:[%s6 + $0x48] sm:$0xf]
        %v1328 = vld [vmem:[%s6 + $0x4c] sm:$0xf]
        %v1329 = vld [vmem:[%s6 + $0x50] sm:$0xf]
        %v1330 = vld [vmem:[%s6 + $0x54] sm:$0xf]
        %v1331 = vld [vmem:[%s6 + $0x58] sm:$0xf]
        %v1332 = vld [vmem:[%s6 + $0x5c] sm:$0xf]
        %v1333 = vpack.c.bf16 %v1304, %v1304
        %v1334 = vlaneseq
        %v1335 = vshrl.u32 %v1334, 7
        %v1336 = vsub.s32 1, %v1335
        %v1337 = vrot.slane %v338, %v1336
        %v1342 = vunpack.c.l.b16 %v1305
        %v1343 = vunpack.c.l.b16 %v1306
        %v1344 = vunpack.c.l.b16 %v1307
        %v1345 = vunpack.c.l.b16 %v1308
        %v1346 = vpack.c.b16 %v1343, %v1342
        %v1347 = vpack.c.b16 %v1345, %v1344
        %v1351 = vsel %vm339, %v1333, 0
        %1353 = vmatprep.subr.bf16.mxu0 0
        %1354 = vmatpush1.bf16.msra.mxu0 %v1346
        %1355 = vmatprep.subr.bf16.mxu0 0
        %1356 = vmatpush1.bf16.msra.mxu0 %v1347
        %1357 = vmatprep.subr.bf16.mxu0 0
        %1358 = vmatpush1.bf16.msra.mxu0 0
        %1359 = vmatprep.subr.bf16.mxu0 0
        %1360 = vmatpush1.bf16.msra.mxu0 0
        %1361 = vmatprep.subr.bf16.mxu0 0
        %1362 = vmatpush1.bf16.msra.mxu0 0
        %1363 = vmatprep.subr.bf16.mxu0 0
        %1364 = vmatpush1.bf16.msra.mxu0 0
        %1365 = vmatprep.subr.bf16.mxu0 0
        %1366 = vmatpush1.bf16.msra.mxu0 0
        %1367 = vmatprep.subr.bf16.mxu0 0
        %1368 = vmatpush1.bf16.msra.mxu0 0
        %1369 = vmatprep.subr.bf16.mxu0 0
        %1370 = vmatpush1.bf16.msra.mxu0 0
        %1371 = vmatprep.subr.bf16.mxu0 0
        %1372 = vmatpush1.bf16.msra.mxu0 0
        %1373 = vmatprep.subr.bf16.mxu0 0
        %1374 = vmatpush1.bf16.msra.mxu0 0
        %1375 = vmatprep.subr.bf16.mxu0 0
        %1376 = vmatpush1.bf16.msra.mxu0 0
        %1377 = vmatprep.subr.bf16.mxu0 0
        %1378 = vmatpush1.bf16.msra.mxu0 0
        %1379 = vmatprep.subr.bf16.mxu0 0
        %1380 = vmatpush1.bf16.msra.mxu0 0
        %1381 = vmatprep.subr.bf16.mxu0 0
        %1382 = vmatpush1.bf16.msra.mxu0 0
        %1383 = vmatprep.subr.bf16.mxu0 0
        %1384 = vmatpush1.bf16.msra.mxu0 0
        %1385 = vmatprep.mubr.bf16.mxu0 0
        %1386 = vmatmul.mubr.bf16.gmra.mrb[0].mxu0 %v1351
        %v1387 = vpop.f32.mrb[0].mxu0
        %v1388 = vadd.f32 %v1337, %v1387
        %v1389 = vpop.f32.mrb[0].mxu0
        %v1390 = vpop.f32.mrb[0].mxu0
        %v1391 = vpop.f32.mrb[0].mxu0
        %1392 = vdwg.mxu0
        %v1393 = vmul.f32 %v1388, 0.5
        %v1394 = vmul.f32 %v1388, 0.70710677
        %v1395 = verf.f32.pop %v1394
        %v1396 = vadd.f32 %v1395, 1.0
        %v1397 = vmul.f32 %v1393, %v1396
        %v1398 = vpack.c.bf16 %v1397, %v1397
        %v1415 = vunpack.c.l.b16 %v1309
        %v1416 = vunpack.c.l.b16 %v1310
        %v1417 = vunpack.c.l.b16 %v1311
        %v1418 = vunpack.c.l.b16 %v1312
        %v1419 = vunpack.c.l.b16 %v1313
        %v1420 = vunpack.c.l.b16 %v1314
        %v1421 = vunpack.c.l.b16 %v1315
        %v1422 = vunpack.c.l.b16 %v1316
        %v1423 = vunpack.c.l.b16 %v1317
        %v1424 = vunpack.c.l.b16 %v1318
        %v1425 = vunpack.c.l.b16 %v1319
        %v1426 = vunpack.c.l.b16 %v1320
        %v1427 = vunpack.c.l.b16 %v1321
        %v1428 = vunpack.c.l.b16 %v1322
        %v1429 = vunpack.c.l.b16 %v1323
        %v1430 = vunpack.c.l.b16 %v1324
        %v1431 = vpack.c.b16 %v1416, %v1415
        %v1432 = vpack.c.b16 %v1418, %v1417
        %v1433 = vpack.c.b16 %v1420, %v1419
        %v1434 = vpack.c.b16 %v1422, %v1421
        %v1435 = vpack.c.b16 %v1424, %v1423
        %v1436 = vpack.c.b16 %v1426, %v1425
        %v1437 = vpack.c.b16 %v1428, %v1427
        %v1438 = vpack.c.b16 %v1430, %v1429
        %1448 = vrot.lane.b32.xlu0 %v1282, 96
        %v1449 = vpop.permute.xlu0 %1448
        %1451 = vmatprep.subr.bf16.mxu0 0
        %1452 = vmatpush1.bf16.msra.mxu0 %v1431
        %1453 = vmatprep.subr.bf16.mxu0 0
        %1454 = vmatpush1.bf16.msra.mxu0 %v1432
        %1455 = vmatprep.subr.bf16.mxu0 0
        %1456 = vmatpush1.bf16.msra.mxu0 %v1433
        %1457 = vmatprep.subr.bf16.mxu0 0
        %1458 = vmatpush1.bf16.msra.mxu0 %v1434
        %1459 = vmatprep.subr.bf16.mxu0 0
        %1460 = vmatpush1.bf16.msra.mxu0 %v1435
        %1461 = vmatprep.subr.bf16.mxu0 0
        %1462 = vmatpush1.bf16.msra.mxu0 %v1436
        %1463 = vmatprep.subr.bf16.mxu0 0
        %1464 = vmatpush1.bf16.msra.mxu0 %v1437
        %1465 = vmatprep.subr.bf16.mxu0 0
        %1466 = vmatpush1.bf16.msra.mxu0 %v1438
        %1467 = vmatprep.subr.bf16.mxu0 0
        %1468 = vmatpush1.bf16.msra.mxu0 0
        %1469 = vmatprep.subr.bf16.mxu0 0
        %1470 = vmatpush1.bf16.msra.mxu0 0
        %1471 = vmatprep.subr.bf16.mxu0 0
        %1472 = vmatpush1.bf16.msra.mxu0 0
        %1473 = vmatprep.subr.bf16.mxu0 0
        %1474 = vmatpush1.bf16.msra.mxu0 0
        %1475 = vmatprep.subr.bf16.mxu0 0
        %1476 = vmatpush1.bf16.msra.mxu0 0
        %1477 = vmatprep.subr.bf16.mxu0 0
        %1478 = vmatpush1.bf16.msra.mxu0 0
        %1479 = vmatprep.subr.bf16.mxu0 0
        %1480 = vmatpush1.bf16.msra.mxu0 0
        %1481 = vmatprep.subr.bf16.mxu0 0
        %1482 = vmatpush1.bf16.msra.mxu0 0
        %1483 = vmatprep.mubr.bf16.mxu0 0
        %1484 = vmatmul.mubr.bf16.gmra.mrb[0].mxu0 %v1398
        %v1485 = vpop.f32.mrb[0].mxu0
        %v1486 = vadd.f32 %v1449, %v1485
        %v1487 = vpop.f32.mrb[0].mxu0
        %v1488 = vpop.f32.mrb[0].mxu0
        %v1489 = vpop.f32.mrb[0].mxu0
        %1490 = vdwg.mxu0
        %v1491 = vadd.f32 %v1283, %v1486
        %v1492 = vpack.c.bf16 %v1491, %v1491
        %v1493 = vlaneseq
        %v1494 = vshrl.u32 %v1493, 7
        %v1495 = vsub.s32 2, %v1494
        %v1496 = vrot.slane %v338, %v1495
        %v1497 = vunpack.c.h.b16 %v1305
        %v1498 = vunpack.c.h.b16 %v1306
        %v1499 = vunpack.c.h.b16 %v1307
        %v1500 = vunpack.c.h.b16 %v1308
        %v1501 = vpack.c.b16 %v1498, %v1497
        %v1502 = vpack.c.b16 %v1500, %v1499
        %v1506 = vsel %vm339, %v1492, 0
        %1508 = vmatprep.subr.bf16.mxu0 0
        %1509 = vmatpush1.bf16.msra.mxu0 %v1501
        %1510 = vmatprep.subr.bf16.mxu0 0
        %1511 = vmatpush1.bf16.msra.mxu0 %v1502
        %1512 = vmatprep.subr.bf16.mxu0 0
        %1513 = vmatpush1.bf16.msra.mxu0 0
        %1514 = vmatprep.subr.bf16.mxu0 0
        %1515 = vmatpush1.bf16.msra.mxu0 0
        %1516 = vmatprep.subr.bf16.mxu0 0
        %1517 = vmatpush1.bf16.msra.mxu0 0
        %1518 = vmatprep.subr.bf16.mxu0 0
        %1519 = vmatpush1.bf16.msra.mxu0 0
        %1520 = vmatprep.subr.bf16.mxu0 0
        %1521 = vmatpush1.bf16.msra.mxu0 0
        %1522 = vmatprep.subr.bf16.mxu0 0
        %1523 = vmatpush1.bf16.msra.mxu0 0
        %1524 = vmatprep.subr.bf16.mxu0 0
        %1525 = vmatpush1.bf16.msra.mxu0 0
        %1526 = vmatprep.subr.bf16.mxu0 0
        %1527 = vmatpush1.bf16.msra.mxu0 0
        %1528 = vmatprep.subr.bf16.mxu0 0
        %1529 = vmatpush1.bf16.msra.mxu0 0
        %1530 = vmatprep.subr.bf16.mxu0 0
        %1531 = vmatpush1.bf16.msra.mxu0 0
        %1532 = vmatprep.subr.bf16.mxu0 0
        %1533 = vmatpush1.bf16.msra.mxu0 0
        %1534 = vmatprep.subr.bf16.mxu0 0
        %1535 = vmatpush1.bf16.msra.mxu0 0
        %1536 = vmatprep.subr.bf16.mxu0 0
        %1537 = vmatpush1.bf16.msra.mxu0 0
        %1538 = vmatprep.subr.bf16.mxu0 0
        %1539 = vmatpush1.bf16.msra.mxu0 0
        %1540 = vmatprep.mubr.bf16.mxu0 0
        %1541 = vmatmul.mubr.bf16.gmra.mrb[0].mxu0 %v1506
        %v1542 = vpop.f32.mrb[0].mxu0
        %v1543 = vadd.f32 %v1496, %v1542
        %v1544 = vpop.f32.mrb[0].mxu0
        %v1545 = vpop.f32.mrb[0].mxu0
        %v1546 = vpop.f32.mrb[0].mxu0
        %1547 = vdwg.mxu0
        %v1548 = vmul.f32 %v1543, 0.5
        %v1549 = vmul.f32 %v1543, 0.70710677
        %v1550 = verf.f32.pop %v1549
        %v1551 = vadd.f32 %v1550, 1.0
        %v1552 = vmul.f32 %v1548, %v1551
        %v1553 = vpack.c.bf16 %v1552, %v1552
        %v1562 = vunpack.c.l.b16 %v1325
        %v1563 = vunpack.c.l.b16 %v1326
        %v1564 = vunpack.c.l.b16 %v1327
        %v1565 = vunpack.c.l.b16 %v1328
        %v1566 = vunpack.c.l.b16 %v1329
        %v1567 = vunpack.c.l.b16 %v1330
        %v1568 = vunpack.c.l.b16 %v1331
        %v1569 = vunpack.c.l.b16 %v1332
        %v1570 = vpack.c.b16 %v1563, %v1562
        %v1571 = vpack.c.b16 %v1565, %v1564
        %v1572 = vpack.c.b16 %v1567, %v1566
        %v1573 = vpack.c.b16 %v1569, %v1568
        %1578 = vrot.lane.b32.xlu0 %v1282, 64
        %v1579 = vpop.permute.xlu0 %1578
        %vm1581 = vcmask 523264
        %v1583 = vsel %vm1581, %v1553, 0
        %1585 = vmatprep.subr.bf16.mxu0 0
        %1586 = vmatpush1.bf16.msra.mxu0 %v1570
        %1587 = vmatprep.subr.bf16.mxu0 0
        %1588 = vmatpush1.bf16.msra.mxu0 %v1571
        %1589 = vmatprep.subr.bf16.mxu0 0
        %1590 = vmatpush1.bf16.msra.mxu0 %v1572
        %1591 = vmatprep.subr.bf16.mxu0 0
        %1592 = vmatpush1.bf16.msra.mxu0 %v1573
        %1593 = vmatprep.subr.bf16.mxu0 0
        %1594 = vmatpush1.bf16.msra.mxu0 0
        %1595 = vmatprep.subr.bf16.mxu0 0
        %1596 = vmatpush1.bf16.msra.mxu0 0
        %1597 = vmatprep.subr.bf16.mxu0 0
        %1598 = vmatpush1.bf16.msra.mxu0 0
        %1599 = vmatprep.subr.bf16.mxu0 0
        %1600 = vmatpush1.bf16.msra.mxu0 0
        %1601 = vmatprep.subr.bf16.mxu0 0
        %1602 = vmatpush1.bf16.msra.mxu0 0
        %1603 = vmatprep.subr.bf16.mxu0 0
        %1604 = vmatpush1.bf16.msra.mxu0 0
        %1605 = vmatprep.subr.bf16.mxu0 0
        %1606 = vmatpush1.bf16.msra.mxu0 0
        %1607 = vmatprep.subr.bf16.mxu0 0
        %1608 = vmatpush1.bf16.msra.mxu0 0
        %1609 = vmatprep.subr.bf16.mxu0 0
        %1610 = vmatpush1.bf16.msra.mxu0 0
        %1611 = vmatprep.subr.bf16.mxu0 0
        %1612 = vmatpush1.bf16.msra.mxu0 0
        %1613 = vmatprep.subr.bf16.mxu0 0
        %1614 = vmatpush1.bf16.msra.mxu0 0
        %1615 = vmatprep.subr.bf16.mxu0 0
        %1616 = vmatpush1.bf16.msra.mxu0 0
        %1617 = vmatprep.mubr.bf16.mxu0 0
        %1618 = vmatmul.mubr.bf16.gmra.mrb[0].mxu0 %v1583
        %v1619 = vpop.f32.mrb[0].mxu0
        %v1620 = vadd.f32 %v1579, %v1619
        %v1621 = vpop.f32.mrb[0].mxu0
        %v1622 = vpop.f32.mrb[0].mxu0
        %v1623 = vpop.f32.mrb[0].mxu0
        %1624 = vdwg.mxu0
        %v1625 = vadd.f32 %v1491, %v1620
        %1626 = vst.msk [vmem:[%s331] sm:$0xff] %vm339, %v1625
        %s1627 = sand.u32 %s211, 1
        %s1628 = scalar_lea.sflag [#allocation4], %s1627
        %s1629 = sand.u32 %s211, 1
        %s1630 = smul.addr %s1629, 8
        %s1631 = scalar_lea.vmem [#allocation5], %s1630
        // Predicated region
        $region57: #{tpu_custom_call.1} parent=51 // pred_check
          %p1632 = pneg %p221
        $region58: #{tpu_custom_call.1} parent=51 // pred_check_branch
          %1634 = sbr.rel (%p1632) target = $region60
        $region59: #{tpu_custom_call.1} parent=51 // pred_region
          %s1636 = ssub.s32 128, 128
          %1637 = vsyncadd %s1628, %s1636
          %s1638 = smul.addr %s25, 128
          %s1639 = scalar_lea.hbm %s8, %s1638
          %s1641 = sshll.u32 %s1631, 4
          %s1642 = int_to_ptr.vmem [resolvable:$true] %s1641
          %1644 = dma.vmem_to_hbm [thread:$0]  %s1642, 128, %s1639, %s1628
        $region60: #{tpu_custom_call.1} parent=51 // pred_fallthru
          _
      $region52: #{tpu_custom_call.1} parent=5 // pred_fallthru
        _
      %p1645 = scmp.le.s32.totalorder 2, %s20
      // Predicated region
      $region61: #{tpu_custom_call.1} parent=5 // pred_check
        %p1646 = pneg %p1645
      $region62: #{tpu_custom_call.1} parent=5 // pred_check_branch
        %1648 = sbr.rel (%p1646) target = $region64
      $region63: #{tpu_custom_call.1} parent=5 // pred_region
        %s1649 = ssub.s32 %s20, 2
        // Predicated region
        $region65: #{tpu_custom_call.1} parent=63 // pred_check
          %p1650 = pneg %p227
        $region66: #{tpu_custom_call.1} parent=63 // pred_check_branch
          %1652 = sbr.rel (%p1650) target = $region68
        $region67: #{tpu_custom_call.1} parent=63 // pred_region
          %s1653 = sand.u32 %s212, 1
          %s1654 = scalar_lea.sflag [#allocation4], %s1653
          %s1655 = sand.u32 %s212, 1
          %s1656 = smul.addr %s1655, 8
          %s1657 = scalar_lea.vmem [#allocation5], %s1656
          %1658 = dma.done %s1654, 128
        $region68: #{tpu_custom_call.1} parent=63 // pred_fallthru
          _
      $region64: #{tpu_custom_call.1} parent=5 // pred_fallthru
        _
    $region6: #{tpu_custom_call.1} parent=1 // loop_footer
      %s24 = sadd.s32 1, %s20
    $region7: #{tpu_custom_call.1} parent=1 // loop_footer_branch
      %19 = sbr.rel target = $region3
    $region8: #{tpu_custom_call.1} parent=1 // loop_exit
      _
    %1659 = vsyncpa [#allocation3], 1
    %s1660 = scalar_lea.sflag [#allocation3], 1
    %1661 = vsyncpa %s1660, 1
    %1662 = vsyncpa [#allocation4], 1
    %s1663 = scalar_lea.sflag [#allocation4], 1
    %1664 = vsyncpa %s1663, 1

</llo_original>
